<compile_context>
chip_gen: v5e
topology: v5e:2x2
jax: 0.10.0
libtpu: 0.0.40
codegen_flags: <defaults>
</compile_context>

<pallas_src>
import functools

import jax
import jax.numpy as jnp
from jax import lax
from jax.experimental import pallas as pl
from jax.experimental.pallas import tpu as pltpu


def vae_kernel(x_emb_ref, eps_ref,
               w1_ref, b1_ref, w2_ref, b2_ref,
               wih_ref, bg_ref, wcat_ref, bout_ref,
               logp_ref, mu_ref, logvar_ref,
               *, hidden_size, latent_dim, max_length):
    H = hidden_size
    G = 4 * H
    B = x_emb_ref.shape[0]        # sublane-padded batch
    V_pad = bout_ref.shape[1]     # lane-padded vocab

    # ---------------- encoder: mean over seq -> Linear -> ReLU -> Linear ----
    x = x_emb_ref[...]                                   # (B, L, H)
    xm = jnp.mean(x, axis=1)                             # (B, H)
    h1 = jnp.maximum(
        jnp.dot(xm, w1_ref[...], preferred_element_type=jnp.float32) + b1_ref[...],
        0.0)
    henc = jnp.dot(h1, w2_ref[...], preferred_element_type=jnp.float32) + b2_ref[...]
    mu = henc[:, :latent_dim]                            # (B, latent)
    log_var = henc[:, latent_dim:]                       # (B, latent)
    mu_ref[...] = mu
    logvar_ref[...] = log_var

    # ---------------- reparameterize: z = mu + eps * exp(0.5 * log_var) -----
    std = jnp.exp(0.5 * log_var)
    z = mu + eps_ref[...] * std                          # (B, latent) == (B, H)

    # ---------------- LSTM decoder (fused recurrence + output projection) ---
    # z is fed at every timestep -> input-gate contribution is constant.
    # b_ih + b_hh are pre-folded into bg_ref in the wrapper.
    gates_x = (jnp.dot(z, wih_ref[...], preferred_element_type=jnp.float32)
               + bg_ref[...])                            # (B, 4H)

    w_cat = wcat_ref[...]                                # (H, 4H+V_pad) bf16, hoisted
    bout_b = jnp.broadcast_to(bout_ref[...], (B, V_pad))  # hoisted broadcast

    # static lane mask: lanes [2H, 3H) are the cell-candidate (tanh) gate
    lane = lax.broadcasted_iota(jnp.int32, (B, G), 1)
    is_g = jnp.logical_and(lane >= 2 * H, lane < 3 * H)

    def gate_activations(gates):
        # two full-vreg EUP passes + one select instead of 4 narrow EUP slices
        sg = jax.nn.sigmoid(gates)
        th = jnp.tanh(gates)
        return jnp.where(is_g, th, sg)                   # [sig(i)|sig(f)|tanh(g)|sig(o)]

    def lstm_update(act, c):
        i_g = act[:, 0 * H:1 * H]
        f_g = act[:, 1 * H:2 * H]
        g_g = act[:, 2 * H:3 * H]
        o_g = act[:, 3 * H:4 * H]
        c_new = f_g * c + i_g * g_g
        h_new = o_g * jnp.tanh(c_new)
        return h_new, c_new

    def log_softmax(logits):
        m = jnp.max(logits, axis=-1, keepdims=True)
        lse = m + jnp.log(jnp.sum(jnp.exp(logits - m), axis=-1, keepdims=True))
        return logits - lse

    # step 0: h_{-1} = c_{-1} = 0 -> the recurrent matmul contributes nothing.
    act0 = gate_activations(gates_x)
    h, c = lstm_update(act0, jnp.zeros((B, H), jnp.float32))

    # steps 1..T-1: one fused (B,H)@(H,4H+V_pad) matmul per step.  The first
    # 4H lanes drive the recurrence; the trailing V_pad lanes are the logits
    # of the *previous* hidden state (shift-by-one), keeping the projection +
    # log_softmax off the h_t -> h_{t+1} critical path.
    def step(t, carry):
        h_prev, c_prev = carry
        g = jnp.dot(h_prev.astype(jnp.bfloat16), w_cat,
                    preferred_element_type=jnp.float32)   # (B, 4H+V_pad)
        logp_ref[t - 1] = log_softmax(g[:, G:] + bout_b)  # output of step t-1
        act = gate_activations(gates_x + g[:, :G])
        return lstm_update(act, c_prev)

    h, c = lax.fori_loop(1, max_length, step, (h, c), unroll=True)

    # epilogue: project the final hidden state.
    g_last = jnp.dot(h.astype(jnp.bfloat16), w_cat,
                     preferred_element_type=jnp.float32)
    logp_ref[max_length - 1] = log_softmax(g_last[:, G:] + bout_b)


def init_params(key, vocab_size, hidden_size, latent_dim):
    """Deterministic synthetic parameters (shapes follow the nn.Module)."""
    V = vocab_size + 1
    ks = jax.random.split(key, 11)
    s = 0.1
    n = lambda k, shape: jax.random.normal(k, shape, jnp.float32) * s
    return dict(
        embedding=n(ks[0], (V, hidden_size)),
        # encoder Linear weights stored as (in, out) == PyTorch weight.T
        w1=n(ks[1], (hidden_size, hidden_size)),
        b1=n(ks[2], (1, hidden_size)),
        w2=n(ks[3], (hidden_size, 2 * latent_dim)),
        b2=n(ks[4], (1, 2 * latent_dim)),
        # LSTM weights stored as (in, 4H) == PyTorch weight_ih_l0.T etc.
        w_ih=n(ks[5], (hidden_size, 4 * hidden_size)),
        w_hh=n(ks[6], (hidden_size, 4 * hidden_size)),
        b_ih=n(ks[7], (1, 4 * hidden_size)),
        b_hh=n(ks[8], (1, 4 * hidden_size)),
        # decoder_output Linear stored as (H, V) == PyTorch weight.T
        w_out=n(ks[9], (hidden_size, V)),
        b_out=n(ks[10], (1, V)),
    )


def vae_forward(x_tokens, eps, params, *, vocab_size, hidden_size,
                latent_dim, max_length):
    assert latent_dim == hidden_size, "reference LSTM needs latent_dim == hidden_size"
    B, L = x_tokens.shape
    V = vocab_size + 1
    H = hidden_size
    V_pad = ((V + 127) // 128) * 128     # lane-dense vocab
    B_pad = ((B + 7) // 8) * 8           # sublane-dense batch

    # Embedding lookup (gather) is glue outside the kernel.
    x_emb = jnp.take(params["embedding"], x_tokens, axis=0)           # (B, L, H)
    x_emb_p = jnp.zeros((B_pad, L, H), jnp.float32).at[:B].set(x_emb)
    eps_p = jnp.zeros((B_pad, latent_dim), jnp.float32).at[:B].set(eps)

    # Pad vocab: zero weight columns, very-negative bias columns so the
    # in-kernel log_softmax over the padded 128 lanes is exact for real cols.
    w_out_p = jnp.zeros((H, V_pad), jnp.float32).at[:, :V].set(params["w_out"])
    b_out_p = jnp.full((1, V_pad), -1e30, jnp.float32).at[:, :V].set(params["b_out"])

    # Fused recurrence + output-projection weights; bf16 MXU operands.
    w_cat = jnp.concatenate([params["w_hh"], w_out_p], axis=1).astype(jnp.bfloat16)
    b_gates = params["b_ih"] + params["b_hh"]

    kernel = functools.partial(vae_kernel, hidden_size=H,
                               latent_dim=latent_dim, max_length=max_length)

    inputs = (x_emb_p, eps_p,
              params["w1"], params["b1"], params["w2"], params["b2"],
              params["w_ih"], b_gates, w_cat, b_out_p)

    vmem = pl.BlockSpec(memory_space=pltpu.MemorySpace.VMEM)
    # TODO(synk): for production batch sizes, add grid=(B_pad // TB,) with
    # dimension_semantics=("parallel",) so v7x's two TensorCores split the
    # batch, and tile x_emb with a BlockSpec instead of whole-array VMEM.
    logp_tbv, mu_p, logvar_p = pl.pallas_call(
        kernel,
        out_shape=(
            jax.ShapeDtypeStruct((max_length, B_pad, V_pad), jnp.float32),
            jax.ShapeDtypeStruct((B_pad, latent_dim), jnp.float32),
            jax.ShapeDtypeStruct((B_pad, latent_dim), jnp.float32),
        ),
        in_specs=[vmem] * len(inputs),
        out_specs=(vmem, vmem, vmem),
    )(*inputs)

    log_probs = jnp.transpose(logp_tbv, (1, 0, 2))[:B, :, :V]   # (B, T, V)
    return log_probs, mu_p[:B], logvar_p[:B]


if __name__ == "__main__":
    # small shapes consistent with the module
    vocab_size = 47          # vocab_size + 1 = 48 embedding rows / output classes
    hidden_size = 32
    latent_dim = 32          # must equal hidden_size for the reference LSTM
    max_length = 8
    B, L = 2, 8

    root = jax.random.PRNGKey(0)
    k_param, k_tok, k_eps = jax.random.split(root, 3)

    params = init_params(k_param, vocab_size, hidden_size, latent_dim)
    x_tokens = jax.random.randint(k_tok, (B, L), 0, vocab_size + 1, dtype=jnp.int32)
    # eps plays the role of torch.randn_like(std) in reparameterize
    eps = jax.random.normal(k_eps, (B, latent_dim), jnp.float32)

    log_probs, mu, log_var = vae_forward(
        x_tokens, eps, params,
        vocab_size=vocab_size, hidden_size=hidden_size,
        latent_dim=latent_dim, max_length=max_length)

    jax.block_until_ready((log_probs, mu, log_var))

    assert log_probs.shape == (B, max_length, vocab_size + 1)
    assert mu.shape == (B, latent_dim) and log_var.shape == (B, latent_dim)
    assert bool(jnp.all(jnp.isfinite(log_probs)))
    print("KERNEL_OK")
</pallas_src>

<mosaic_0001>
module attributes {stable_mosaic.version = 11 : i64} {
  func.func @vae_kernel(%arg0: memref<8x8x32xf32, #tpu.memory_space<vmem>>, %arg1: memref<8x32xf32, #tpu.memory_space<vmem>>, %arg2: memref<32x32xf32, #tpu.memory_space<vmem>>, %arg3: memref<1x32xf32, #tpu.memory_space<vmem>>, %arg4: memref<32x64xf32, #tpu.memory_space<vmem>>, %arg5: memref<1x64xf32, #tpu.memory_space<vmem>>, %arg6: memref<32x128xf32, #tpu.memory_space<vmem>>, %arg7: memref<1x128xf32, #tpu.memory_space<vmem>>, %arg8: memref<32x256xbf16, #tpu.memory_space<vmem>>, %arg9: memref<1x128xf32, #tpu.memory_space<vmem>>, %arg10: memref<8x8x128xf32, #tpu.memory_space<vmem>>, %arg11: memref<8x32xf32, #tpu.memory_space<vmem>>, %arg12: memref<8x32xf32, #tpu.memory_space<vmem>>) attributes {dimension_semantics = [], scalar_prefetch = 0 : i64, scratch_operands = 0 : i64, tpu.core_type = #tpu.core_type<tc>} {
    %c0 = arith.constant 0 : index
    %c0_0 = arith.constant 0 : index
    %c0_1 = arith.constant 0 : index
    %0 = vector.load %arg0[%c0, %c0_0, %c0_1] : memref<8x8x32xf32, #tpu.memory_space<vmem>>, vector<8x8x32xf32>
    %cst = arith.constant dense<0.000000e+00> : vector<8x32xf32>
    %1 = vector.multi_reduction <add>, %0, %cst [1] : vector<8x8x32xf32> to vector<8x32xf32>
    %cst_2 = arith.constant 8.000000e+00 : f32
    %2 = vector.broadcast %cst_2 : f32 to vector<8x32xf32>
    %3 = arith.divf %1, %2 : vector<8x32xf32>
    %c0_3 = arith.constant 0 : index
    %c0_4 = arith.constant 0 : index
    %4 = vector.load %arg2[%c0_3, %c0_4] : memref<32x32xf32, #tpu.memory_space<vmem>>, vector<32x32xf32>
    %cst_5 = arith.constant dense<0.000000e+00> : vector<8x32xf32>
    %5 = tpu.matmul %3, %4, %cst_5 {dimension_numbers = #tpu.dot_dimension_numbers<[1], [0], [0], [1], [0, 0, 1, 1], [], []>} : vector<8x32xf32>, vector<32x32xf32>, vector<8x32xf32> -> vector<8x32xf32>
    %c0_6 = arith.constant 0 : index
    %c0_7 = arith.constant 0 : index
    %6 = vector.load %arg3[%c0_6, %c0_7] : memref<1x32xf32, #tpu.memory_space<vmem>>, vector<1x32xf32>
    %7 = vector.broadcast %6 : vector<1x32xf32> to vector<8x32xf32>
    %8 = arith.addf %5, %7 : vector<8x32xf32>
    %cst_8 = arith.constant 0.000000e+00 : f32
    %9 = vector.broadcast %cst_8 : f32 to vector<8x32xf32>
    %10 = arith.maximumf %8, %9 : vector<8x32xf32>
    %c0_9 = arith.constant 0 : index
    %c0_10 = arith.constant 0 : index
    %11 = vector.load %arg4[%c0_9, %c0_10] : memref<32x64xf32, #tpu.memory_space<vmem>>, vector<32x64xf32>
    %cst_11 = arith.constant dense<0.000000e+00> : vector<8x64xf32>
    %12 = tpu.matmul %10, %11, %cst_11 {dimension_numbers = #tpu.dot_dimension_numbers<[1], [0], [0], [1], [0, 0, 1, 1], [], []>} : vector<8x32xf32>, vector<32x64xf32>, vector<8x64xf32> -> vector<8x64xf32>
    %c0_12 = arith.constant 0 : index
    %c0_13 = arith.constant 0 : index
    %13 = vector.load %arg5[%c0_12, %c0_13] : memref<1x64xf32, #tpu.memory_space<vmem>>, vector<1x64xf32>
    %14 = vector.broadcast %13 : vector<1x64xf32> to vector<8x64xf32>
    %15 = arith.addf %12, %14 : vector<8x64xf32>
    %16 = vector.extract_strided_slice %15 {offsets = [0, 0], sizes = [8, 32], strides = [1, 1]} : vector<8x64xf32> to vector<8x32xf32>
    %17 = vector.extract_strided_slice %15 {offsets = [0, 32], sizes = [8, 32], strides = [1, 1]} : vector<8x64xf32> to vector<8x32xf32>
    %c0_14 = arith.constant 0 : index
    %c0_15 = arith.constant 0 : index
    %18 = vector.load %arg11[%c0_14, %c0_15] : memref<8x32xf32, #tpu.memory_space<vmem>>, vector<8x32xf32>
    tpu.vector_store %arg11[%c0_14, %c0_15], %16 {strides = array<i32>} : memref<8x32xf32, #tpu.memory_space<vmem>>, vector<8x32xf32>,
    %c0_16 = arith.constant 0 : index
    %c0_17 = arith.constant 0 : index
    %19 = vector.load %arg12[%c0_16, %c0_17] : memref<8x32xf32, #tpu.memory_space<vmem>>, vector<8x32xf32>
    tpu.vector_store %arg12[%c0_16, %c0_17], %17 {strides = array<i32>} : memref<8x32xf32, #tpu.memory_space<vmem>>, vector<8x32xf32>,
    %cst_18 = arith.constant 5.000000e-01 : f32
    %20 = vector.broadcast %cst_18 : f32 to vector<8x32xf32>
    %21 = arith.mulf %20, %17 : vector<8x32xf32>
    %22 = math.exp %21 : vector<8x32xf32>
    %c0_19 = arith.constant 0 : index
    %c0_20 = arith.constant 0 : index
    %23 = vector.load %arg1[%c0_19, %c0_20] : memref<8x32xf32, #tpu.memory_space<vmem>>, vector<8x32xf32>
    %24 = arith.mulf %23, %22 : vector<8x32xf32>
    %25 = arith.addf %16, %24 : vector<8x32xf32>
    %c0_21 = arith.constant 0 : index
    %c0_22 = arith.constant 0 : index
    %26 = vector.load %arg6[%c0_21, %c0_22] : memref<32x128xf32, #tpu.memory_space<vmem>>, vector<32x128xf32>
    %cst_23 = arith.constant dense<0.000000e+00> : vector<8x128xf32>
    %27 = tpu.matmul %25, %26, %cst_23 {dimension_numbers = #tpu.dot_dimension_numbers<[1], [0], [0], [1], [0, 0, 1, 1], [], []>} : vector<8x32xf32>, vector<32x128xf32>, vector<8x128xf32> -> vector<8x128xf32>
    %c0_24 = arith.constant 0 : index
    %c0_25 = arith.constant 0 : index
    %28 = vector.load %arg7[%c0_24, %c0_25] : memref<1x128xf32, #tpu.memory_space<vmem>>, vector<1x128xf32>
    %29 = vector.broadcast %28 : vector<1x128xf32> to vector<8x128xf32>
    %30 = arith.addf %27, %29 : vector<8x128xf32>
    %c0_26 = arith.constant 0 : index
    %c0_27 = arith.constant 0 : index
    %31 = vector.load %arg8[%c0_26, %c0_27] : memref<32x256xbf16, #tpu.memory_space<vmem>>, vector<32x256xbf16>
    %c0_28 = arith.constant 0 : index
    %c0_29 = arith.constant 0 : index
    %32 = vector.load %arg9[%c0_28, %c0_29] : memref<1x128xf32, #tpu.memory_space<vmem>>, vector<1x128xf32>
    %33 = vector.shape_cast %32 : vector<1x128xf32> to vector<1x128xf32>
    %34 = vector.broadcast %33 : vector<1x128xf32> to vector<8x128xf32>
    %35 = tpu.iota {dimensions = array<i32: 1>} : vector<8x128xi32>
    %c64_i32 = arith.constant 64 : i32
    %36 = vector.broadcast %c64_i32 : i32 to vector<8x128xi32>
    %37 = arith.cmpi sge, %35, %36 : vector<8x128xi32>
    %c96_i32 = arith.constant 96 : i32
    %38 = vector.broadcast %c96_i32 : i32 to vector<8x128xi32>
    %39 = arith.cmpi slt, %35, %38 : vector<8x128xi32>
    %40 = arith.andi %37, %39 : vector<8x128xi1>
    %41 = arith.negf %30 : vector<8x128xf32>
    %42 = math.exp %41 : vector<8x128xf32>
    %cst_30 = arith.constant 1.000000e+00 : f32
    %43 = vector.broadcast %cst_30 : f32 to vector<8x128xf32>
    %44 = arith.addf %43, %42 : vector<8x128xf32>
    %45 = arith.divf %43, %44 : vector<8x128xf32>
    %46 = math.tanh %30 : vector<8x128xf32>
    %47 = arith.select %40, %46, %45 : vector<8x128xi1>, vector<8x128xf32>
    %cst_31 = arith.constant 0.000000e+00 : f32
    %48 = vector.broadcast %cst_31 : f32 to vector<8x32xf32>
    %49 = vector.extract_strided_slice %47 {offsets = [0, 0], sizes = [8, 32], strides = [1, 1]} : vector<8x128xf32> to vector<8x32xf32>
    %50 = vector.extract_strided_slice %47 {offsets = [0, 32], sizes = [8, 32], strides = [1, 1]} : vector<8x128xf32> to vector<8x32xf32>
    %51 = vector.extract_strided_slice %47 {offsets = [0, 64], sizes = [8, 32], strides = [1, 1]} : vector<8x128xf32> to vector<8x32xf32>
    %52 = vector.extract_strided_slice %47 {offsets = [0, 96], sizes = [8, 32], strides = [1, 1]} : vector<8x128xf32> to vector<8x32xf32>
    %53 = arith.mulf %50, %48 : vector<8x32xf32>
    %54 = arith.mulf %49, %51 : vector<8x32xf32>
    %55 = arith.addf %53, %54 : vector<8x32xf32>
    %56 = math.tanh %55 : vector<8x32xf32>
    %57 = arith.mulf %52, %56 : vector<8x32xf32>
    %c1_i32 = arith.constant 1 : i32
    %58 = arith.truncf %57 : vector<8x32xf32> to vector<8x32xbf16>
    %cst_32 = arith.constant dense<0.000000e+00> : vector<8x256xf32>
    %59 = tpu.matmul %58, %31, %cst_32 {dimension_numbers = #tpu.dot_dimension_numbers<[1], [0], [0], [1], [0, 0, 1, 1], [], []>} : vector<8x32xbf16>, vector<32x256xbf16>, vector<8x256xf32> -> vector<8x256xf32>
    %60 = vector.extract_strided_slice %59 {offsets = [0, 128], sizes = [8, 128], strides = [1, 1]} : vector<8x256xf32> to vector<8x128xf32>
    %61 = arith.addf %60, %34 : vector<8x128xf32>
    %cst_33 = arith.constant dense<0xFF800000> : vector<8xf32>
    %62 = vector.multi_reduction <maximumf>, %61, %cst_33 [1] : vector<8x128xf32> to vector<8xf32>
    %63 = vector.shape_cast %62 : vector<8xf32> to vector<8x1xf32>
    %64 = vector.broadcast %63 : vector<8x1xf32> to vector<8x128xf32>
    %65 = arith.subf %61, %64 : vector<8x128xf32>
    %66 = math.exp %65 : vector<8x128xf32>
    %cst_34 = arith.constant dense<0.000000e+00> : vector<8xf32>
    %67 = vector.multi_reduction <add>, %66, %cst_34 [1] : vector<8x128xf32> to vector<8xf32>
    %68 = vector.shape_cast %67 : vector<8xf32> to vector<8x1xf32>
    %69 = math.log %68 : vector<8x1xf32>
    %70 = arith.addf %63, %69 : vector<8x1xf32>
    %71 = vector.broadcast %70 : vector<8x1xf32> to vector<8x128xf32>
    %72 = arith.subf %61, %71 : vector<8x128xf32>
    %c1_i32_35 = arith.constant 1 : i32
    %73 = arith.subi %c1_i32, %c1_i32_35 : i32
    %74 = arith.index_cast %73 : i32 to index
    %c0_36 = arith.constant 0 : index
    %c0_37 = arith.constant 0 : index
    %75 = vector.load %arg10[%74, %c0_36, %c0_37] : memref<8x8x128xf32, #tpu.memory_space<vmem>>, vector<1x8x128xf32>
    %76 = vector.shape_cast %75 : vector<1x8x128xf32> to vector<8x128xf32>
    %77 = vector.shape_cast %72 : vector<8x128xf32> to vector<1x8x128xf32>
    tpu.vector_store %arg10[%74, %c0_36, %c0_37], %77 {strides = array<i32>} : memref<8x8x128xf32, #tpu.memory_space<vmem>>, vector<1x8x128xf32>,
    %78 = vector.extract_strided_slice %59 {offsets = [0, 0], sizes = [8, 128], strides = [1, 1]} : vector<8x256xf32> to vector<8x128xf32>
    %79 = arith.addf %30, %78 : vector<8x128xf32>
    %80 = arith.negf %79 : vector<8x128xf32>
    %81 = math.exp %80 : vector<8x128xf32>
    %cst_38 = arith.constant 1.000000e+00 : f32
    %82 = vector.broadcast %cst_38 : f32 to vector<8x128xf32>
    %83 = arith.addf %82, %81 : vector<8x128xf32>
    %84 = arith.divf %82, %83 : vector<8x128xf32>
    %85 = math.tanh %79 : vector<8x128xf32>
    %86 = arith.select %40, %85, %84 : vector<8x128xi1>, vector<8x128xf32>
    %87 = vector.extract_strided_slice %86 {offsets = [0, 0], sizes = [8, 32], strides = [1, 1]} : vector<8x128xf32> to vector<8x32xf32>
    %88 = vector.extract_strided_slice %86 {offsets = [0, 32], sizes = [8, 32], strides = [1, 1]} : vector<8x128xf32> to vector<8x32xf32>
    %89 = vector.extract_strided_slice %86 {offsets = [0, 64], sizes = [8, 32], strides = [1, 1]} : vector<8x128xf32> to vector<8x32xf32>
    %90 = vector.extract_strided_slice %86 {offsets = [0, 96], sizes = [8, 32], strides = [1, 1]} : vector<8x128xf32> to vector<8x32xf32>
    %91 = arith.mulf %88, %55 : vector<8x32xf32>
    %92 = arith.mulf %87, %89 : vector<8x32xf32>
    %93 = arith.addf %91, %92 : vector<8x32xf32>
    %94 = math.tanh %93 : vector<8x32xf32>
    %95 = arith.mulf %90, %94 : vector<8x32xf32>
    %c2_i32 = arith.constant 2 : i32
    %96 = arith.truncf %95 : vector<8x32xf32> to vector<8x32xbf16>
    %cst_39 = arith.constant dense<0.000000e+00> : vector<8x256xf32>
    %97 = tpu.matmul %96, %31, %cst_39 {dimension_numbers = #tpu.dot_dimension_numbers<[1], [0], [0], [1], [0, 0, 1, 1], [], []>} : vector<8x32xbf16>, vector<32x256xbf16>, vector<8x256xf32> -> vector<8x256xf32>
    %98 = vector.extract_strided_slice %97 {offsets = [0, 128], sizes = [8, 128], strides = [1, 1]} : vector<8x256xf32> to vector<8x128xf32>
    %99 = arith.addf %98, %34 : vector<8x128xf32>
    %cst_40 = arith.constant dense<0xFF800000> : vector<8xf32>
    %100 = vector.multi_reduction <maximumf>, %99, %cst_40 [1] : vector<8x128xf32> to vector<8xf32>
    %101 = vector.shape_cast %100 : vector<8xf32> to vector<8x1xf32>
    %102 = vector.broadcast %101 : vector<8x1xf32> to vector<8x128xf32>
    %103 = arith.subf %99, %102 : vector<8x128xf32>
    %104 = math.exp %103 : vector<8x128xf32>
    %cst_41 = arith.constant dense<0.000000e+00> : vector<8xf32>
    %105 = vector.multi_reduction <add>, %104, %cst_41 [1] : vector<8x128xf32> to vector<8xf32>
    %106 = vector.shape_cast %105 : vector<8xf32> to vector<8x1xf32>
    %107 = math.log %106 : vector<8x1xf32>
    %108 = arith.addf %101, %107 : vector<8x1xf32>
    %109 = vector.broadcast %108 : vector<8x1xf32> to vector<8x128xf32>
    %110 = arith.subf %99, %109 : vector<8x128xf32>
    %c1_i32_42 = arith.constant 1 : i32
    %111 = arith.subi %c2_i32, %c1_i32_42 : i32
    %112 = arith.index_cast %111 : i32 to index
    %c0_43 = arith.constant 0 : index
    %c0_44 = arith.constant 0 : index
    %113 = vector.load %arg10[%112, %c0_43, %c0_44] : memref<8x8x128xf32, #tpu.memory_space<vmem>>, vector<1x8x128xf32>
    %114 = vector.shape_cast %113 : vector<1x8x128xf32> to vector<8x128xf32>
    %115 = vector.shape_cast %110 : vector<8x128xf32> to vector<1x8x128xf32>
    tpu.vector_store %arg10[%112, %c0_43, %c0_44], %115 {strides = array<i32>} : memref<8x8x128xf32, #tpu.memory_space<vmem>>, vector<1x8x128xf32>,
    %116 = vector.extract_strided_slice %97 {offsets = [0, 0], sizes = [8, 128], strides = [1, 1]} : vector<8x256xf32> to vector<8x128xf32>
    %117 = arith.addf %30, %116 : vector<8x128xf32>
    %118 = arith.negf %117 : vector<8x128xf32>
    %119 = math.exp %118 : vector<8x128xf32>
    %cst_45 = arith.constant 1.000000e+00 : f32
    %120 = vector.broadcast %cst_45 : f32 to vector<8x128xf32>
    %121 = arith.addf %120, %119 : vector<8x128xf32>
    %122 = arith.divf %120, %121 : vector<8x128xf32>
    %123 = math.tanh %117 : vector<8x128xf32>
    %124 = arith.select %40, %123, %122 : vector<8x128xi1>, vector<8x128xf32>
    %125 = vector.extract_strided_slice %124 {offsets = [0, 0], sizes = [8, 32], strides = [1, 1]} : vector<8x128xf32> to vector<8x32xf32>
    %126 = vector.extract_strided_slice %124 {offsets = [0, 32], sizes = [8, 32], strides = [1, 1]} : vector<8x128xf32> to vector<8x32xf32>
    %127 = vector.extract_strided_slice %124 {offsets = [0, 64], sizes = [8, 32], strides = [1, 1]} : vector<8x128xf32> to vector<8x32xf32>
    %128 = vector.extract_strided_slice %124 {offsets = [0, 96], sizes = [8, 32], strides = [1, 1]} : vector<8x128xf32> to vector<8x32xf32>
    %129 = arith.mulf %126, %93 : vector<8x32xf32>
    %130 = arith.mulf %125, %127 : vector<8x32xf32>
    %131 = arith.addf %129, %130 : vector<8x32xf32>
    %132 = math.tanh %131 : vector<8x32xf32>
    %133 = arith.mulf %128, %132 : vector<8x32xf32>
    %c3_i32 = arith.constant 3 : i32
    %134 = arith.truncf %133 : vector<8x32xf32> to vector<8x32xbf16>
    %cst_46 = arith.constant dense<0.000000e+00> : vector<8x256xf32>
    %135 = tpu.matmul %134, %31, %cst_46 {dimension_numbers = #tpu.dot_dimension_numbers<[1], [0], [0], [1], [0, 0, 1, 1], [], []>} : vector<8x32xbf16>, vector<32x256xbf16>, vector<8x256xf32> -> vector<8x256xf32>
    %136 = vector.extract_strided_slice %135 {offsets = [0, 128], sizes = [8, 128], strides = [1, 1]} : vector<8x256xf32> to vector<8x128xf32>
    %137 = arith.addf %136, %34 : vector<8x128xf32>
    %cst_47 = arith.constant dense<0xFF800000> : vector<8xf32>
    %138 = vector.multi_reduction <maximumf>, %137, %cst_47 [1] : vector<8x128xf32> to vector<8xf32>
    %139 = vector.shape_cast %138 : vector<8xf32> to vector<8x1xf32>
    %140 = vector.broadcast %139 : vector<8x1xf32> to vector<8x128xf32>
    %141 = arith.subf %137, %140 : vector<8x128xf32>
    %142 = math.exp %141 : vector<8x128xf32>
    %cst_48 = arith.constant dense<0.000000e+00> : vector<8xf32>
    %143 = vector.multi_reduction <add>, %142, %cst_48 [1] : vector<8x128xf32> to vector<8xf32>
    %144 = vector.shape_cast %143 : vector<8xf32> to vector<8x1xf32>
    %145 = math.log %144 : vector<8x1xf32>
    %146 = arith.addf %139, %145 : vector<8x1xf32>
    %147 = vector.broadcast %146 : vector<8x1xf32> to vector<8x128xf32>
    %148 = arith.subf %137, %147 : vector<8x128xf32>
    %c1_i32_49 = arith.constant 1 : i32
    %149 = arith.subi %c3_i32, %c1_i32_49 : i32
    %150 = arith.index_cast %149 : i32 to index
    %c0_50 = arith.constant 0 : index
    %c0_51 = arith.constant 0 : index
    %151 = vector.load %arg10[%150, %c0_50, %c0_51] : memref<8x8x128xf32, #tpu.memory_space<vmem>>, vector<1x8x128xf32>
    %152 = vector.shape_cast %151 : vector<1x8x128xf32> to vector<8x128xf32>
    %153 = vector.shape_cast %148 : vector<8x128xf32> to vector<1x8x128xf32>
    tpu.vector_store %arg10[%150, %c0_50, %c0_51], %153 {strides = array<i32>} : memref<8x8x128xf32, #tpu.memory_space<vmem>>, vector<1x8x128xf32>,
    %154 = vector.extract_strided_slice %135 {offsets = [0, 0], sizes = [8, 128], strides = [1, 1]} : vector<8x256xf32> to vector<8x128xf32>
    %155 = arith.addf %30, %154 : vector<8x128xf32>
    %156 = arith.negf %155 : vector<8x128xf32>
    %157 = math.exp %156 : vector<8x128xf32>
    %cst_52 = arith.constant 1.000000e+00 : f32
    %158 = vector.broadcast %cst_52 : f32 to vector<8x128xf32>
    %159 = arith.addf %158, %157 : vector<8x128xf32>
    %160 = arith.divf %158, %159 : vector<8x128xf32>
    %161 = math.tanh %155 : vector<8x128xf32>
    %162 = arith.select %40, %161, %160 : vector<8x128xi1>, vector<8x128xf32>
    %163 = vector.extract_strided_slice %162 {offsets = [0, 0], sizes = [8, 32], strides = [1, 1]} : vector<8x128xf32> to vector<8x32xf32>
    %164 = vector.extract_strided_slice %162 {offsets = [0, 32], sizes = [8, 32], strides = [1, 1]} : vector<8x128xf32> to vector<8x32xf32>
    %165 = vector.extract_strided_slice %162 {offsets = [0, 64], sizes = [8, 32], strides = [1, 1]} : vector<8x128xf32> to vector<8x32xf32>
    %166 = vector.extract_strided_slice %162 {offsets = [0, 96], sizes = [8, 32], strides = [1, 1]} : vector<8x128xf32> to vector<8x32xf32>
    %167 = arith.mulf %164, %131 : vector<8x32xf32>
    %168 = arith.mulf %163, %165 : vector<8x32xf32>
    %169 = arith.addf %167, %168 : vector<8x32xf32>
    %170 = math.tanh %169 : vector<8x32xf32>
    %171 = arith.mulf %166, %170 : vector<8x32xf32>
    %c4_i32 = arith.constant 4 : i32
    %172 = arith.truncf %171 : vector<8x32xf32> to vector<8x32xbf16>
    %cst_53 = arith.constant dense<0.000000e+00> : vector<8x256xf32>
    %173 = tpu.matmul %172, %31, %cst_53 {dimension_numbers = #tpu.dot_dimension_numbers<[1], [0], [0], [1], [0, 0, 1, 1], [], []>} : vector<8x32xbf16>, vector<32x256xbf16>, vector<8x256xf32> -> vector<8x256xf32>
    %174 = vector.extract_strided_slice %173 {offsets = [0, 128], sizes = [8, 128], strides = [1, 1]} : vector<8x256xf32> to vector<8x128xf32>
    %175 = arith.addf %174, %34 : vector<8x128xf32>
    %cst_54 = arith.constant dense<0xFF800000> : vector<8xf32>
    %176 = vector.multi_reduction <maximumf>, %175, %cst_54 [1] : vector<8x128xf32> to vector<8xf32>
    %177 = vector.shape_cast %176 : vector<8xf32> to vector<8x1xf32>
    %178 = vector.broadcast %177 : vector<8x1xf32> to vector<8x128xf32>
    %179 = arith.subf %175, %178 : vector<8x128xf32>
    %180 = math.exp %179 : vector<8x128xf32>
    %cst_55 = arith.constant dense<0.000000e+00> : vector<8xf32>
    %181 = vector.multi_reduction <add>, %180, %cst_55 [1] : vector<8x128xf32> to vector<8xf32>
    %182 = vector.shape_cast %181 : vector<8xf32> to vector<8x1xf32>
    %183 = math.log %182 : vector<8x1xf32>
    %184 = arith.addf %177, %183 : vector<8x1xf32>
    %185 = vector.broadcast %184 : vector<8x1xf32> to vector<8x128xf32>
    %186 = arith.subf %175, %185 : vector<8x128xf32>
    %c1_i32_56 = arith.constant 1 : i32
    %187 = arith.subi %c4_i32, %c1_i32_56 : i32
    %188 = arith.index_cast %187 : i32 to index
    %c0_57 = arith.constant 0 : index
    %c0_58 = arith.constant 0 : index
    %189 = vector.load %arg10[%188, %c0_57, %c0_58] : memref<8x8x128xf32, #tpu.memory_space<vmem>>, vector<1x8x128xf32>
    %190 = vector.shape_cast %189 : vector<1x8x128xf32> to vector<8x128xf32>
    %191 = vector.shape_cast %186 : vector<8x128xf32> to vector<1x8x128xf32>
    tpu.vector_store %arg10[%188, %c0_57, %c0_58], %191 {strides = array<i32>} : memref<8x8x128xf32, #tpu.memory_space<vmem>>, vector<1x8x128xf32>,
    %192 = vector.extract_strided_slice %173 {offsets = [0, 0], sizes = [8, 128], strides = [1, 1]} : vector<8x256xf32> to vector<8x128xf32>
    %193 = arith.addf %30, %192 : vector<8x128xf32>
    %194 = arith.negf %193 : vector<8x128xf32>
    %195 = math.exp %194 : vector<8x128xf32>
    %cst_59 = arith.constant 1.000000e+00 : f32
    %196 = vector.broadcast %cst_59 : f32 to vector<8x128xf32>
    %197 = arith.addf %196, %195 : vector<8x128xf32>
    %198 = arith.divf %196, %197 : vector<8x128xf32>
    %199 = math.tanh %193 : vector<8x128xf32>
    %200 = arith.select %40, %199, %198 : vector<8x128xi1>, vector<8x128xf32>
    %201 = vector.extract_strided_slice %200 {offsets = [0, 0], sizes = [8, 32], strides = [1, 1]} : vector<8x128xf32> to vector<8x32xf32>
    %202 = vector.extract_strided_slice %200 {offsets = [0, 32], sizes = [8, 32], strides = [1, 1]} : vector<8x128xf32> to vector<8x32xf32>
    %203 = vector.extract_strided_slice %200 {offsets = [0, 64], sizes = [8, 32], strides = [1, 1]} : vector<8x128xf32> to vector<8x32xf32>
    %204 = vector.extract_strided_slice %200 {offsets = [0, 96], sizes = [8, 32], strides = [1, 1]} : vector<8x128xf32> to vector<8x32xf32>
    %205 = arith.mulf %202, %169 : vector<8x32xf32>
    %206 = arith.mulf %201, %203 : vector<8x32xf32>
    %207 = arith.addf %205, %206 : vector<8x32xf32>
    %208 = math.tanh %207 : vector<8x32xf32>
    %209 = arith.mulf %204, %208 : vector<8x32xf32>
    %c5_i32 = arith.constant 5 : i32
    %210 = arith.truncf %209 : vector<8x32xf32> to vector<8x32xbf16>
    %cst_60 = arith.constant dense<0.000000e+00> : vector<8x256xf32>
    %211 = tpu.matmul %210, %31, %cst_60 {dimension_numbers = #tpu.dot_dimension_numbers<[1], [0], [0], [1], [0, 0, 1, 1], [], []>} : vector<8x32xbf16>, vector<32x256xbf16>, vector<8x256xf32> -> vector<8x256xf32>
    %212 = vector.extract_strided_slice %211 {offsets = [0, 128], sizes = [8, 128], strides = [1, 1]} : vector<8x256xf32> to vector<8x128xf32>
    %213 = arith.addf %212, %34 : vector<8x128xf32>
    %cst_61 = arith.constant dense<0xFF800000> : vector<8xf32>
    %214 = vector.multi_reduction <maximumf>, %213, %cst_61 [1] : vector<8x128xf32> to vector<8xf32>
    %215 = vector.shape_cast %214 : vector<8xf32> to vector<8x1xf32>
    %216 = vector.broadcast %215 : vector<8x1xf32> to vector<8x128xf32>
    %217 = arith.subf %213, %216 : vector<8x128xf32>
    %218 = math.exp %217 : vector<8x128xf32>
    %cst_62 = arith.constant dense<0.000000e+00> : vector<8xf32>
    %219 = vector.multi_reduction <add>, %218, %cst_62 [1] : vector<8x128xf32> to vector<8xf32>
    %220 = vector.shape_cast %219 : vector<8xf32> to vector<8x1xf32>
    %221 = math.log %220 : vector<8x1xf32>
    %222 = arith.addf %215, %221 : vector<8x1xf32>
    %223 = vector.broadcast %222 : vector<8x1xf32> to vector<8x128xf32>
    %224 = arith.subf %213, %223 : vector<8x128xf32>
    %c1_i32_63 = arith.constant 1 : i32
    %225 = arith.subi %c5_i32, %c1_i32_63 : i32
    %226 = arith.index_cast %225 : i32 to index
    %c0_64 = arith.constant 0 : index
    %c0_65 = arith.constant 0 : index
    %227 = vector.load %arg10[%226, %c0_64, %c0_65] : memref<8x8x128xf32, #tpu.memory_space<vmem>>, vector<1x8x128xf32>
    %228 = vector.shape_cast %227 : vector<1x8x128xf32> to vector<8x128xf32>
    %229 = vector.shape_cast %224 : vector<8x128xf32> to vector<1x8x128xf32>
    tpu.vector_store %arg10[%226, %c0_64, %c0_65], %229 {strides = array<i32>} : memref<8x8x128xf32, #tpu.memory_space<vmem>>, vector<1x8x128xf32>,
    %230 = vector.extract_strided_slice %211 {offsets = [0, 0], sizes = [8, 128], strides = [1, 1]} : vector<8x256xf32> to vector<8x128xf32>
    %231 = arith.addf %30, %230 : vector<8x128xf32>
    %232 = arith.negf %231 : vector<8x128xf32>
    %233 = math.exp %232 : vector<8x128xf32>
    %cst_66 = arith.constant 1.000000e+00 : f32
    %234 = vector.broadcast %cst_66 : f32 to vector<8x128xf32>
    %235 = arith.addf %234, %233 : vector<8x128xf32>
    %236 = arith.divf %234, %235 : vector<8x128xf32>
    %237 = math.tanh %231 : vector<8x128xf32>
    %238 = arith.select %40, %237, %236 : vector<8x128xi1>, vector<8x128xf32>
    %239 = vector.extract_strided_slice %238 {offsets = [0, 0], sizes = [8, 32], strides = [1, 1]} : vector<8x128xf32> to vector<8x32xf32>
    %240 = vector.extract_strided_slice %238 {offsets = [0, 32], sizes = [8, 32], strides = [1, 1]} : vector<8x128xf32> to vector<8x32xf32>
    %241 = vector.extract_strided_slice %238 {offsets = [0, 64], sizes = [8, 32], strides = [1, 1]} : vector<8x128xf32> to vector<8x32xf32>
    %242 = vector.extract_strided_slice %238 {offsets = [0, 96], sizes = [8, 32], strides = [1, 1]} : vector<8x128xf32> to vector<8x32xf32>
    %243 = arith.mulf %240, %207 : vector<8x32xf32>
    %244 = arith.mulf %239, %241 : vector<8x32xf32>
    %245 = arith.addf %243, %244 : vector<8x32xf32>
    %246 = math.tanh %245 : vector<8x32xf32>
    %247 = arith.mulf %242, %246 : vector<8x32xf32>
    %c6_i32 = arith.constant 6 : i32
    %248 = arith.truncf %247 : vector<8x32xf32> to vector<8x32xbf16>
    %cst_67 = arith.constant dense<0.000000e+00> : vector<8x256xf32>
    %249 = tpu.matmul %248, %31, %cst_67 {dimension_numbers = #tpu.dot_dimension_numbers<[1], [0], [0], [1], [0, 0, 1, 1], [], []>} : vector<8x32xbf16>, vector<32x256xbf16>, vector<8x256xf32> -> vector<8x256xf32>
    %250 = vector.extract_strided_slice %249 {offsets = [0, 128], sizes = [8, 128], strides = [1, 1]} : vector<8x256xf32> to vector<8x128xf32>
    %251 = arith.addf %250, %34 : vector<8x128xf32>
    %cst_68 = arith.constant dense<0xFF800000> : vector<8xf32>
    %252 = vector.multi_reduction <maximumf>, %251, %cst_68 [1] : vector<8x128xf32> to vector<8xf32>
    %253 = vector.shape_cast %252 : vector<8xf32> to vector<8x1xf32>
    %254 = vector.broadcast %253 : vector<8x1xf32> to vector<8x128xf32>
    %255 = arith.subf %251, %254 : vector<8x128xf32>
    %256 = math.exp %255 : vector<8x128xf32>
    %cst_69 = arith.constant dense<0.000000e+00> : vector<8xf32>
    %257 = vector.multi_reduction <add>, %256, %cst_69 [1] : vector<8x128xf32> to vector<8xf32>
    %258 = vector.shape_cast %257 : vector<8xf32> to vector<8x1xf32>
    %259 = math.log %258 : vector<8x1xf32>
    %260 = arith.addf %253, %259 : vector<8x1xf32>
    %261 = vector.broadcast %260 : vector<8x1xf32> to vector<8x128xf32>
    %262 = arith.subf %251, %261 : vector<8x128xf32>
    %c1_i32_70 = arith.constant 1 : i32
    %263 = arith.subi %c6_i32, %c1_i32_70 : i32
    %264 = arith.index_cast %263 : i32 to index
    %c0_71 = arith.constant 0 : index
    %c0_72 = arith.constant 0 : index
    %265 = vector.load %arg10[%264, %c0_71, %c0_72] : memref<8x8x128xf32, #tpu.memory_space<vmem>>, vector<1x8x128xf32>
    %266 = vector.shape_cast %265 : vector<1x8x128xf32> to vector<8x128xf32>
    %267 = vector.shape_cast %262 : vector<8x128xf32> to vector<1x8x128xf32>
    tpu.vector_store %arg10[%264, %c0_71, %c0_72], %267 {strides = array<i32>} : memref<8x8x128xf32, #tpu.memory_space<vmem>>, vector<1x8x128xf32>,
    %268 = vector.extract_strided_slice %249 {offsets = [0, 0], sizes = [8, 128], strides = [1, 1]} : vector<8x256xf32> to vector<8x128xf32>
    %269 = arith.addf %30, %268 : vector<8x128xf32>
    %270 = arith.negf %269 : vector<8x128xf32>
    %271 = math.exp %270 : vector<8x128xf32>
    %cst_73 = arith.constant 1.000000e+00 : f32
    %272 = vector.broadcast %cst_73 : f32 to vector<8x128xf32>
    %273 = arith.addf %272, %271 : vector<8x128xf32>
    %274 = arith.divf %272, %273 : vector<8x128xf32>
    %275 = math.tanh %269 : vector<8x128xf32>
    %276 = arith.select %40, %275, %274 : vector<8x128xi1>, vector<8x128xf32>
    %277 = vector.extract_strided_slice %276 {offsets = [0, 0], sizes = [8, 32], strides = [1, 1]} : vector<8x128xf32> to vector<8x32xf32>
    %278 = vector.extract_strided_slice %276 {offsets = [0, 32], sizes = [8, 32], strides = [1, 1]} : vector<8x128xf32> to vector<8x32xf32>
    %279 = vector.extract_strided_slice %276 {offsets = [0, 64], sizes = [8, 32], strides = [1, 1]} : vector<8x128xf32> to vector<8x32xf32>
    %280 = vector.extract_strided_slice %276 {offsets = [0, 96], sizes = [8, 32], strides = [1, 1]} : vector<8x128xf32> to vector<8x32xf32>
    %281 = arith.mulf %278, %245 : vector<8x32xf32>
    %282 = arith.mulf %277, %279 : vector<8x32xf32>
    %283 = arith.addf %281, %282 : vector<8x32xf32>
    %284 = math.tanh %283 : vector<8x32xf32>
    %285 = arith.mulf %280, %284 : vector<8x32xf32>
    %c7_i32 = arith.constant 7 : i32
    %286 = arith.truncf %285 : vector<8x32xf32> to vector<8x32xbf16>
    %cst_74 = arith.constant dense<0.000000e+00> : vector<8x256xf32>
    %287 = tpu.matmul %286, %31, %cst_74 {dimension_numbers = #tpu.dot_dimension_numbers<[1], [0], [0], [1], [0, 0, 1, 1], [], []>} : vector<8x32xbf16>, vector<32x256xbf16>, vector<8x256xf32> -> vector<8x256xf32>
    %288 = vector.extract_strided_slice %287 {offsets = [0, 128], sizes = [8, 128], strides = [1, 1]} : vector<8x256xf32> to vector<8x128xf32>
    %289 = arith.addf %288, %34 : vector<8x128xf32>
    %cst_75 = arith.constant dense<0xFF800000> : vector<8xf32>
    %290 = vector.multi_reduction <maximumf>, %289, %cst_75 [1] : vector<8x128xf32> to vector<8xf32>
    %291 = vector.shape_cast %290 : vector<8xf32> to vector<8x1xf32>
    %292 = vector.broadcast %291 : vector<8x1xf32> to vector<8x128xf32>
    %293 = arith.subf %289, %292 : vector<8x128xf32>
    %294 = math.exp %293 : vector<8x128xf32>
    %cst_76 = arith.constant dense<0.000000e+00> : vector<8xf32>
    %295 = vector.multi_reduction <add>, %294, %cst_76 [1] : vector<8x128xf32> to vector<8xf32>
    %296 = vector.shape_cast %295 : vector<8xf32> to vector<8x1xf32>
    %297 = math.log %296 : vector<8x1xf32>
    %298 = arith.addf %291, %297 : vector<8x1xf32>
    %299 = vector.broadcast %298 : vector<8x1xf32> to vector<8x128xf32>
    %300 = arith.subf %289, %299 : vector<8x128xf32>
    %c1_i32_77 = arith.constant 1 : i32
    %301 = arith.subi %c7_i32, %c1_i32_77 : i32
    %302 = arith.index_cast %301 : i32 to index
    %c0_78 = arith.constant 0 : index
    %c0_79 = arith.constant 0 : index
    %303 = vector.load %arg10[%302, %c0_78, %c0_79] : memref<8x8x128xf32, #tpu.memory_space<vmem>>, vector<1x8x128xf32>
    %304 = vector.shape_cast %303 : vector<1x8x128xf32> to vector<8x128xf32>
    %305 = vector.shape_cast %300 : vector<8x128xf32> to vector<1x8x128xf32>
    tpu.vector_store %arg10[%302, %c0_78, %c0_79], %305 {strides = array<i32>} : memref<8x8x128xf32, #tpu.memory_space<vmem>>, vector<1x8x128xf32>,
    %306 = vector.extract_strided_slice %287 {offsets = [0, 0], sizes = [8, 128], strides = [1, 1]} : vector<8x256xf32> to vector<8x128xf32>
    %307 = arith.addf %30, %306 : vector<8x128xf32>
    %308 = arith.negf %307 : vector<8x128xf32>
    %309 = math.exp %308 : vector<8x128xf32>
    %cst_80 = arith.constant 1.000000e+00 : f32
    %310 = vector.broadcast %cst_80 : f32 to vector<8x128xf32>
    %311 = arith.addf %310, %309 : vector<8x128xf32>
    %312 = arith.divf %310, %311 : vector<8x128xf32>
    %313 = math.tanh %307 : vector<8x128xf32>
    %314 = arith.select %40, %313, %312 : vector<8x128xi1>, vector<8x128xf32>
    %315 = vector.extract_strided_slice %314 {offsets = [0, 0], sizes = [8, 32], strides = [1, 1]} : vector<8x128xf32> to vector<8x32xf32>
    %316 = vector.extract_strided_slice %314 {offsets = [0, 32], sizes = [8, 32], strides = [1, 1]} : vector<8x128xf32> to vector<8x32xf32>
    %317 = vector.extract_strided_slice %314 {offsets = [0, 64], sizes = [8, 32], strides = [1, 1]} : vector<8x128xf32> to vector<8x32xf32>
    %318 = vector.extract_strided_slice %314 {offsets = [0, 96], sizes = [8, 32], strides = [1, 1]} : vector<8x128xf32> to vector<8x32xf32>
    %319 = arith.mulf %316, %283 : vector<8x32xf32>
    %320 = arith.mulf %315, %317 : vector<8x32xf32>
    %321 = arith.addf %319, %320 : vector<8x32xf32>
    %322 = math.tanh %321 : vector<8x32xf32>
    %323 = arith.mulf %318, %322 : vector<8x32xf32>
    %c7_i32_81 = arith.constant 7 : i32
    %324 = arith.truncf %323 : vector<8x32xf32> to vector<8x32xbf16>
    %cst_82 = arith.constant dense<0.000000e+00> : vector<8x256xf32>
    %325 = tpu.matmul %324, %31, %cst_82 {dimension_numbers = #tpu.dot_dimension_numbers<[1], [0], [0], [1], [0, 0, 1, 1], [], []>} : vector<8x32xbf16>, vector<32x256xbf16>, vector<8x256xf32> -> vector<8x256xf32>
    %326 = vector.extract_strided_slice %325 {offsets = [0, 128], sizes = [8, 128], strides = [1, 1]} : vector<8x256xf32> to vector<8x128xf32>
    %327 = arith.addf %326, %34 : vector<8x128xf32>
    %cst_83 = arith.constant dense<0xFF800000> : vector<8xf32>
    %328 = vector.multi_reduction <maximumf>, %327, %cst_83 [1] : vector<8x128xf32> to vector<8xf32>
    %329 = vector.shape_cast %328 : vector<8xf32> to vector<8x1xf32>
    %330 = vector.broadcast %329 : vector<8x1xf32> to vector<8x128xf32>
    %331 = arith.subf %327, %330 : vector<8x128xf32>
    %332 = math.exp %331 : vector<8x128xf32>
    %cst_84 = arith.constant dense<0.000000e+00> : vector<8xf32>
    %333 = vector.multi_reduction <add>, %332, %cst_84 [1] : vector<8x128xf32> to vector<8xf32>
    %334 = vector.shape_cast %333 : vector<8xf32> to vector<8x1xf32>
    %335 = math.log %334 : vector<8x1xf32>
    %336 = arith.addf %329, %335 : vector<8x1xf32>
    %337 = vector.broadcast %336 : vector<8x1xf32> to vector<8x128xf32>
    %338 = arith.subf %327, %337 : vector<8x128xf32>
    %c7 = arith.constant 7 : index
    %c0_85 = arith.constant 0 : index
    %c0_86 = arith.constant 0 : index
    %339 = vector.load %arg10[%c7, %c0_85, %c0_86] : memref<8x8x128xf32, #tpu.memory_space<vmem>>, vector<1x8x128xf32>
    %340 = vector.shape_cast %339 : vector<1x8x128xf32> to vector<8x128xf32>
    %341 = vector.shape_cast %338 : vector<8x128xf32> to vector<1x8x128xf32>
    tpu.vector_store %arg10[%c7, %c0_85, %c0_86], %341 {strides = array<i32>} : memref<8x8x128xf32, #tpu.memory_space<vmem>>, vector<1x8x128xf32>,
    return
  }
}

</mosaic_0001>

<llo_original>
// kernel: tpu_custom_call.1
$region0: #{tpu_custom_call.1}
  #allocation0 [shape = 'u32[]', space=smem, size = 0x4, offset = 0x4, fixed_abs, tag = 'smem constant byte address 0x4 - core index']
  #allocation1 [shape = 'u32[72,128]{1,0:T(1,128)}', space=vmem, size = 0x9000, scoped, tag = 'internal scratch']
  %s0 = inlined_call_operand.hbm [shape: f32[8,8,32], index: 0, kind: input, shape index: {}]
  %s1 = inlined_call_operand.hbm [shape: f32[8,32], index: 1, kind: input, shape index: {}]
  %s2 = inlined_call_operand.hbm [shape: f32[32,32], index: 2, kind: input, shape index: {}]
  %s3 = inlined_call_operand.vmem [shape: f32[1,32], index: 3, kind: input, shape index: {}]
  %s4 = inlined_call_operand.hbm [shape: f32[32,64], index: 4, kind: input, shape index: {}]
  %s5 = inlined_call_operand.vmem [shape: f32[1,64], index: 5, kind: input, shape index: {}]
  %s6 = inlined_call_operand.hbm [shape: f32[32,128], index: 6, kind: input, shape index: {}]
  %s7 = inlined_call_operand.vmem [shape: f32[1,128], index: 7, kind: input, shape index: {}]
  %s8 = inlined_call_operand.hbm [shape: bf16[32,256], index: 8, kind: input, shape index: {}]
  %s9 = inlined_call_operand.vmem [shape: f32[1,128], index: 9, kind: input, shape index: {}]
  %s10 = inlined_call_operand.hbm [shape: f32[8,8,128], index: 10, kind: output, shape index: {0}]
  %s11 = inlined_call_operand.hbm [shape: f32[8,32], index: 11, kind: output, shape index: {1}]
  %s12 = inlined_call_operand.hbm [shape: f32[8,32], index: 12, kind: output, shape index: {2}]
  %13 = xla_tuple %s10, %s11, %s12
  %s14 = sld [smem:[#allocation0]]
  $region90: #{tpu_custom_call.1} parent=0
    _
  %s16 = ssub.s32 1, %s14
  %s17 = scalar_select 0, %s16, %s14
  $region1: #{tpu_custom_call.1} parent=0
    #allocation2 [shape = 'u8[32768]{0}', space=vmem, size = 0x8000, scoped, tag = 'input window, operand 0, single buffered']
    #allocation3 [shape = 's32[1]{0}', space=sflag, size = 0x4, scoped, tag = 'scoped memory for tpu_custom_call.1']
    #allocation4 [shape = 's32[1]{0}', space=sflag, size = 0x4, scoped, tag = 'scoped memory for tpu_custom_call.1']
    #allocation5 [shape = 'u8[4096]{0}', space=vmem, size = 0x1000, scoped, tag = 'input window, operand 1, single buffered']
    #allocation6 [shape = 's32[1]{0}', space=sflag, size = 0x4, scoped, tag = 'scoped memory for tpu_custom_call.1']
    #allocation7 [shape = 'u8[16384]{0}', space=vmem, size = 0x4000, scoped, tag = 'input window, operand 2, single buffered']
    #allocation8 [shape = 'u8[16384]{0}', space=vmem, size = 0x4000, scoped, tag = 'input window, operand 4, single buffered']
    #allocation9 [shape = 's32[1]{0}', space=sflag, size = 0x4, scoped, tag = 'scoped memory for tpu_custom_call.1']
    #allocation10 [shape = 'u8[16384]{0}', space=vmem, size = 0x4000, scoped, tag = 'input window, operand 6, single buffered']
    #allocation11 [shape = 'u8[16384]{0}', space=vmem, size = 0x4000, scoped, tag = 'input window, operand 8, single buffered']
    #allocation12 [shape = 's32[1]{0}', space=sflag, size = 0x4, scoped, tag = 'scoped memory for tpu_custom_call.1']
    #allocation13 [shape = 'u8[32768]{0}', space=vmem, size = 0x8000, scoped, tag = 'output window, operand 0, single buffered']
    #allocation14 [shape = 'u8[4096]{0}', space=vmem, size = 0x1000, scoped, tag = 'output window, operand 1, single buffered']
    #allocation15 [shape = 's32[1]{0}', space=sflag, size = 0x4, scoped, tag = 'scoped memory for tpu_custom_call.1']
    #allocation16 [shape = 'u8[4096]{0}', space=vmem, size = 0x1000, scoped, tag = 'output window, operand 2, single buffered']
    %18 = vsyncpa [#allocation3], 0
    %19 = vsyncpa [#allocation6], 0
    %20 = vsyncpa [#allocation9], 0
    %21 = vsyncpa [#allocation12], 0
    %22 = vsyncpa [#allocation4], 0
    %23 = vsyncpa [#allocation15], 0
    // Predicated region
    $region2: #{tpu_custom_call.1} parent=1 // pred_check
      _
    $region3: #{tpu_custom_call.1} parent=1 // pred_check_branch
      %25 = sbr.rel (0) target = $region5
    $region4: #{tpu_custom_call.1} parent=1 // pred_region
      %27 = vsyncadd [#allocation3], 0
      %s28 = sshll.u32 %s0, 4
      %s29 = int_to_ptr.hbm [resolvable:$true] %s28
      %s30 = sshll.u32 [#allocation2], 4
      %s31 = int_to_ptr.vmem [resolvable:$true] %s30
      %36 = dma.hbm_to_vmem [thread:$0]  %s29, 1024, %s31, [#allocation3], 128, 128, 8
    $region5: #{tpu_custom_call.1} parent=1 // pred_fallthru
      _
    // Predicated region
    $region6: #{tpu_custom_call.1} parent=1 // pred_check
      _
    $region7: #{tpu_custom_call.1} parent=1 // pred_check_branch
      %38 = sbr.rel (0) target = $region9
    $region8: #{tpu_custom_call.1} parent=1 // pred_region
      %40 = vsyncadd [#allocation6], 0
      %s42 = sshll.u32 %s1, 4
      %s43 = int_to_ptr.hbm [resolvable:$true] %s42
      %s44 = sshll.u32 [#allocation5], 4
      %s45 = int_to_ptr.vmem [resolvable:$true] %s44
      %47 = dma.hbm_to_vmem [thread:$0]  %s43, 128, %s45, [#allocation6]
    $region9: #{tpu_custom_call.1} parent=1 // pred_fallthru
      _
    // Predicated region
    $region10: #{tpu_custom_call.1} parent=1 // pred_check
      _
    $region11: #{tpu_custom_call.1} parent=1 // pred_check_branch
      %49 = sbr.rel (0) target = $region13
    $region12: #{tpu_custom_call.1} parent=1 // pred_region
      %51 = vsyncadd [#allocation6], 0
      %s52 = sshll.u32 %s2, 4
      %s53 = int_to_ptr.hbm [resolvable:$true] %s52
      %s54 = sshll.u32 [#allocation7], 4
      %s55 = int_to_ptr.vmem [resolvable:$true] %s54
      %60 = dma.hbm_to_vmem [thread:$0]  %s53, 512, %s55, [#allocation6], 128, 128, 8
    $region13: #{tpu_custom_call.1} parent=1 // pred_fallthru
      _
    // Predicated region
    $region14: #{tpu_custom_call.1} parent=1 // pred_check
      _
    $region15: #{tpu_custom_call.1} parent=1 // pred_check_branch
      %62 = sbr.rel (0) target = $region17
    $region16: #{tpu_custom_call.1} parent=1 // pred_region
      _
    $region17: #{tpu_custom_call.1} parent=1 // pred_fallthru
      _
    // Predicated region
    $region18: #{tpu_custom_call.1} parent=1 // pred_check
      _
    $region19: #{tpu_custom_call.1} parent=1 // pred_check_branch
      %64 = sbr.rel (0) target = $region21
    $region20: #{tpu_custom_call.1} parent=1 // pred_region
      %66 = vsyncadd [#allocation9], 0
      %s67 = sshll.u32 %s4, 4
      %s68 = int_to_ptr.hbm [resolvable:$true] %s67
      %s69 = sshll.u32 [#allocation8], 4
      %s70 = int_to_ptr.vmem [resolvable:$true] %s69
      %75 = dma.hbm_to_vmem [thread:$0]  %s68, 512, %s70, [#allocation9], 128, 128, 8
    $region21: #{tpu_custom_call.1} parent=1 // pred_fallthru
      _
    // Predicated region
    $region22: #{tpu_custom_call.1} parent=1 // pred_check
      _
    $region23: #{tpu_custom_call.1} parent=1 // pred_check_branch
      %77 = sbr.rel (0) target = $region25
    $region24: #{tpu_custom_call.1} parent=1 // pred_region
      _
    $region25: #{tpu_custom_call.1} parent=1 // pred_fallthru
      _
    // Predicated region
    $region26: #{tpu_custom_call.1} parent=1 // pred_check
      _
    $region27: #{tpu_custom_call.1} parent=1 // pred_check_branch
      %79 = sbr.rel (0) target = $region29
    $region28: #{tpu_custom_call.1} parent=1 // pred_region
      %81 = vsyncadd [#allocation9], 0
      %s82 = sshll.u32 %s6, 4
      %s83 = int_to_ptr.hbm [resolvable:$true] %s82
      %s84 = sshll.u32 [#allocation10], 4
      %s85 = int_to_ptr.vmem [resolvable:$true] %s84
      %90 = dma.hbm_to_vmem [thread:$0]  %s83, 512, %s85, [#allocation9], 128, 128, 8
    $region29: #{tpu_custom_call.1} parent=1 // pred_fallthru
      _
    // Predicated region
    $region30: #{tpu_custom_call.1} parent=1 // pred_check
      _
    $region31: #{tpu_custom_call.1} parent=1 // pred_check_branch
      %92 = sbr.rel (0) target = $region33
    $region32: #{tpu_custom_call.1} parent=1 // pred_region
      _
    $region33: #{tpu_custom_call.1} parent=1 // pred_fallthru
      _
    // Predicated region
    $region34: #{tpu_custom_call.1} parent=1 // pred_check
      _
    $region35: #{tpu_custom_call.1} parent=1 // pred_check_branch
      %94 = sbr.rel (0) target = $region37
    $region36: #{tpu_custom_call.1} parent=1 // pred_region
      %96 = vsyncadd [#allocation12], 0
      %s97 = sshll.u32 %s8, 4
      %s98 = int_to_ptr.hbm [resolvable:$true] %s97
      %s99 = sshll.u32 [#allocation11], 4
      %s100 = int_to_ptr.vmem [resolvable:$true] %s99
      %105 = dma.hbm_to_vmem [thread:$0]  %s98, 512, %s100, [#allocation12], 128, 128, 8
    $region37: #{tpu_custom_call.1} parent=1 // pred_fallthru
      _
    // Predicated region
    $region38: #{tpu_custom_call.1} parent=1 // pred_check
      _
    $region39: #{tpu_custom_call.1} parent=1 // pred_check_branch
      %107 = sbr.rel (0) target = $region41
    $region40: #{tpu_custom_call.1} parent=1 // pred_region
      _
    $region41: #{tpu_custom_call.1} parent=1 // pred_fallthru
      _
    // Predicated region
    $region42: #{tpu_custom_call.1} parent=1 // pred_check
      _
    $region43: #{tpu_custom_call.1} parent=1 // pred_check_branch
      %109 = sbr.rel (0) target = $region45
    $region44: #{tpu_custom_call.1} parent=1 // pred_region
      %111 = dma.done [#allocation3], 1024
    $region45: #{tpu_custom_call.1} parent=1 // pred_fallthru
      _
    // Predicated region
    $region46: #{tpu_custom_call.1} parent=1 // pred_check
      _
    $region47: #{tpu_custom_call.1} parent=1 // pred_check_branch
      %113 = sbr.rel (0) target = $region49
    $region48: #{tpu_custom_call.1} parent=1 // pred_region
      %115 = dma.done [#allocation6], 128
    $region49: #{tpu_custom_call.1} parent=1 // pred_fallthru
      _
    // Predicated region
    $region50: #{tpu_custom_call.1} parent=1 // pred_check
      _
    $region51: #{tpu_custom_call.1} parent=1 // pred_check_branch
      %117 = sbr.rel (0) target = $region53
    $region52: #{tpu_custom_call.1} parent=1 // pred_region
      %119 = dma.done [#allocation6], 512
    $region53: #{tpu_custom_call.1} parent=1 // pred_fallthru
      _
    // Predicated region
    $region54: #{tpu_custom_call.1} parent=1 // pred_check
      _
    $region55: #{tpu_custom_call.1} parent=1 // pred_check_branch
      %121 = sbr.rel (0) target = $region57
    $region56: #{tpu_custom_call.1} parent=1 // pred_region
      %123 = dma.done [#allocation9], 512
    $region57: #{tpu_custom_call.1} parent=1 // pred_fallthru
      _
    // Predicated region
    $region58: #{tpu_custom_call.1} parent=1 // pred_check
      _
    $region59: #{tpu_custom_call.1} parent=1 // pred_check_branch
      %125 = sbr.rel (0) target = $region61
    $region60: #{tpu_custom_call.1} parent=1 // pred_region
      %127 = dma.done [#allocation9], 512
    $region61: #{tpu_custom_call.1} parent=1 // pred_fallthru
      _
    // Predicated region
    $region62: #{tpu_custom_call.1} parent=1 // pred_check
      _
    $region63: #{tpu_custom_call.1} parent=1 // pred_check_branch
      %129 = sbr.rel (0) target = $region65
    $region64: #{tpu_custom_call.1} parent=1 // pred_region
      %131 = dma.done [#allocation12], 512
    $region65: #{tpu_custom_call.1} parent=1 // pred_fallthru
      _
    %v133 = vld [vmem:[#allocation2] sm:$0xff]
    %v134 = vld [vmem:[#allocation2 + $0x8] sm:$0xff]
    %v135 = vld [vmem:[#allocation2 + $0x10] sm:$0xff]
    %v136 = vld [vmem:[#allocation2 + $0x18] sm:$0xff]
    %v137 = vld [vmem:[#allocation2 + $0x20] sm:$0xff]
    %v138 = vld [vmem:[#allocation2 + $0x28] sm:$0xff]
    %v139 = vld [vmem:[#allocation2 + $0x30] sm:$0xff]
    %v140 = vld [vmem:[#allocation2 + $0x38] sm:$0xff]
    %vm141 = vcmask 261120
    %v142 = vsel %vm141, %v133, 0.0
    %v143 = vrot.slane %v142, 4
    %v144 = vadd.f32 %v142, %v143
    %v145 = vrot.slane %v144, 2
    %v146 = vadd.f32 %v144, %v145
    %v147 = vrot.slane %v146, 1
    %v148 = vadd.f32 %v146, %v147
    %v149 = vsel %vm141, %v134, 0.0
    %v150 = vrot.slane %v149, 4
    %v151 = vadd.f32 %v149, %v150
    %v152 = vrot.slane %v151, 2
    %v153 = vadd.f32 %v151, %v152
    %v154 = vrot.slane %v153, 1
    %v155 = vadd.f32 %v153, %v154
    %v156 = vsel %vm141, %v135, 0.0
    %v157 = vrot.slane %v156, 4
    %v158 = vadd.f32 %v156, %v157
    %v159 = vrot.slane %v158, 2
    %v160 = vadd.f32 %v158, %v159
    %v161 = vrot.slane %v160, 1
    %v162 = vadd.f32 %v160, %v161
    %v163 = vsel %vm141, %v136, 0.0
    %v164 = vrot.slane %v163, 4
    %v165 = vadd.f32 %v163, %v164
    %v166 = vrot.slane %v165, 2
    %v167 = vadd.f32 %v165, %v166
    %v168 = vrot.slane %v167, 1
    %v169 = vadd.f32 %v167, %v168
    %v170 = vsel %vm141, %v137, 0.0
    %v171 = vrot.slane %v170, 4
    %v172 = vadd.f32 %v170, %v171
    %v173 = vrot.slane %v172, 2
    %v174 = vadd.f32 %v172, %v173
    %v175 = vrot.slane %v174, 1
    %v176 = vadd.f32 %v174, %v175
    %v177 = vsel %vm141, %v138, 0.0
    %v178 = vrot.slane %v177, 4
    %v179 = vadd.f32 %v177, %v178
    %v180 = vrot.slane %v179, 2
    %v181 = vadd.f32 %v179, %v180
    %v182 = vrot.slane %v181, 1
    %v183 = vadd.f32 %v181, %v182
    %v184 = vsel %vm141, %v139, 0.0
    %v185 = vrot.slane %v184, 4
    %v186 = vadd.f32 %v184, %v185
    %v187 = vrot.slane %v186, 2
    %v188 = vadd.f32 %v186, %v187
    %v189 = vrot.slane %v188, 1
    %v190 = vadd.f32 %v188, %v189
    %v191 = vsel %vm141, %v140, 0.0
    %v192 = vrot.slane %v191, 4
    %v193 = vadd.f32 %v191, %v192
    %v194 = vrot.slane %v193, 2
    %v195 = vadd.f32 %v193, %v194
    %v196 = vrot.slane %v195, 1
    %v197 = vadd.f32 %v195, %v196
    %v198 = vrcp.pop 8.0
    %v199 = vmul.f32 8.0, %v198
    %v200 = vsub.f32 1.0, %v199
    %v201 = vmul.f32 %v198, %v200
    %v202 = vadd.f32 %v198, %v201
    %vm203 = vweird.f32 %v198
    %v204 = vsel %vm203, %v198, %v202
    %v205 = vmul.f32 %v148, %v204
    %v206 = vmul.f32 %v155, %v204
    %v207 = vmul.f32 %v162, %v204
    %v208 = vmul.f32 %v169, %v204
    %v209 = vmul.f32 %v176, %v204
    %v210 = vmul.f32 %v183, %v204
    %v211 = vmul.f32 %v190, %v204
    %v212 = vmul.f32 %v197, %v204
    %v213 = vld [vmem:[#allocation7] sm:$0xff]
    %v214 = vld [vmem:[#allocation7 + $0x8] sm:$0xff]
    %v215 = vld [vmem:[#allocation7 + $0x10] sm:$0xff]
    %v216 = vld [vmem:[#allocation7 + $0x18] sm:$0xff]
    %v217 = vld [vmem:[%s3] sm:$0x1]
    %v219 = vperm.slane %v217, 0
    %vm229 = vcmask 1041409
    %v230 = vsel %vm229, %v206, %v205
    %vm231 = vcmask 1042434
    %v232 = vsel %vm231, %v207, %v230
    %vm233 = vcmask 1043459
    %v234 = vsel %vm233, %v208, %v232
    %vm235 = vcmask 1044484
    %v236 = vsel %vm235, %v209, %v234
    %vm237 = vcmask 1045509
    %v238 = vsel %vm237, %v210, %v236
    %vm239 = vcmask 1046534
    %v240 = vsel %vm239, %v211, %v238
    %vm241 = vcmask 1047559
    %v242 = vsel %vm241, %v212, %v240
    %v243 = vsel %vm141, %v242, 0
    %245 = vmatpush.msra.mxu0 0.0
    %246 = vmatpush.msra.mxu0 0.0
    %247 = vmatpush.msra.mxu0 0.0
    %248 = vmatpush.msra.mxu0 0.0
    %249 = vmatpush.msra.mxu0 0.0
    %250 = vmatpush.msra.mxu0 0.0
    %251 = vmatpush.msra.mxu0 0.0
    %252 = vmatpush.msra.mxu0 0.0
    %253 = vmatpush.msra.mxu0 0.0
    %254 = vmatpush.msra.mxu0 0.0
    %255 = vmatpush.msra.mxu0 0.0
    %256 = vmatpush.msra.mxu0 0.0
    %257 = vmatpush.msra.mxu0 %v216
    %258 = vmatpush.msra.mxu0 %v215
    %259 = vmatpush.msra.mxu0 %v214
    %260 = vmatpush.msra.mxu0 %v213
    %261 = vmatmul.f32.gmra.mxu0 %v243
    %v262 = vpop.f32.mrf.mxu0
    %v263 = vadd.f32 %v219, %v262
    %264 = vdwg.mxu0
    %v265 = vmax.f32 %v263, 0.0
    %v266 = vld [vmem:[#allocation8] sm:$0xff]
    %v267 = vld [vmem:[#allocation8 + $0x8] sm:$0xff]
    %v268 = vld [vmem:[#allocation8 + $0x10] sm:$0xff]
    %v269 = vld [vmem:[#allocation8 + $0x18] sm:$0xff]
    %v270 = vld [vmem:[%s5] sm:$0x1]
    %v272 = vperm.slane %v270, 0
    %v275 = vsel %vm141, %v265, 0
    %277 = vmatpush.msra.mxu0 0.0
    %278 = vmatpush.msra.mxu0 0.0
    %279 = vmatpush.msra.mxu0 0.0
    %280 = vmatpush.msra.mxu0 0.0
    %281 = vmatpush.msra.mxu0 0.0
    %282 = vmatpush.msra.mxu0 0.0
    %283 = vmatpush.msra.mxu0 0.0
    %284 = vmatpush.msra.mxu0 0.0
    %285 = vmatpush.msra.mxu0 0.0
    %286 = vmatpush.msra.mxu0 0.0
    %287 = vmatpush.msra.mxu0 0.0
    %288 = vmatpush.msra.mxu0 0.0
    %289 = vmatpush.msra.mxu0 %v269
    %290 = vmatpush.msra.mxu0 %v268
    %291 = vmatpush.msra.mxu0 %v267
    %292 = vmatpush.msra.mxu0 %v266
    %293 = vmatmul.f32.gmra.mxu0 %v275
    %v294 = vpop.f32.mrf.mxu0
    %v295 = vadd.f32 %v272, %v294
    %296 = vdwg.mxu0
    %297 = vst.msk [vmem:[#allocation14] sm:$0xff] %vm141, %v295
    %299 = vrot.lane.b32.xlu0 %v295, 96
    %v300 = vpop.permute.xlu0 %299
    %302 = vst.msk [vmem:[#allocation16] sm:$0xff] %vm141, %v300
    %v303 = vmul.f32 %v295, 0.5
    %v304 = vmul.f32 %v303, 1.442695
    %v305 = vpow.pop %v304
    %v306 = vld [vmem:[#allocation5] sm:$0xff]
    %308 = vrot.lane.b32.xlu0 %v305, 96
    %v309 = vpop.permute.xlu0 %308
    %v311 = vmul.f32 %v306, %v309
    %v312 = vadd.f32 %v295, %v311
    %v313 = vld [vmem:[#allocation10] sm:$0xff]
    %v314 = vld [vmem:[#allocation10 + $0x8] sm:$0xff]
    %v315 = vld [vmem:[#allocation10 + $0x10] sm:$0xff]
    %v316 = vld [vmem:[#allocation10 + $0x18] sm:$0xff]
    %v317 = vld [vmem:[%s7] sm:$0x1]
    %v319 = vperm.slane %v317, 0
    %v322 = vsel %vm141, %v312, 0
    %324 = vmatpush.msra.mxu0 0.0
    %325 = vmatpush.msra.mxu0 0.0
    %326 = vmatpush.msra.mxu0 0.0
    %327 = vmatpush.msra.mxu0 0.0
    %328 = vmatpush.msra.mxu0 0.0
    %329 = vmatpush.msra.mxu0 0.0
    %330 = vmatpush.msra.mxu0 0.0
    %331 = vmatpush.msra.mxu0 0.0
    %332 = vmatpush.msra.mxu0 0.0
    %333 = vmatpush.msra.mxu0 0.0
    %334 = vmatpush.msra.mxu0 0.0
    %335 = vmatpush.msra.mxu0 0.0
    %336 = vmatpush.msra.mxu0 %v316
    %337 = vmatpush.msra.mxu0 %v315
    %338 = vmatpush.msra.mxu0 %v314
    %339 = vmatpush.msra.mxu0 %v313
    %340 = vmatmul.f32.gmra.mxu0 %v322
    %v341 = vpop.f32.mrf.mxu0
    %v342 = vadd.f32 %v319, %v341
    %343 = vdwg.mxu0
    %v344 = vld [vmem:[#allocation11] sm:$0xff]
    %v345 = vld [vmem:[#allocation11 + $0x8] sm:$0xff]
    %v346 = vld [vmem:[#allocation11 + $0x10] sm:$0xff]
    %v347 = vld [vmem:[#allocation11 + $0x18] sm:$0xff]
    %v348 = vld [vmem:[%s9] sm:$0x1]
    %v350 = vperm.slane %v348, 0
    %v352 = vlaneseq
    %v353 = vand.u32 %v352, 127
    %vm354 = vcmp.ge.s32.totalorder %v353, 64
    %vm355 = vcmp.lt.s32.totalorder %v353, 96
    %vm356 = vmand %vm354, %vm355
    %v357 = vxor.u32 %v342, 2147483648
    %v358 = vmul.f32 %v357, 1.442695
    %v359 = vpow.pop %v358
    %v360 = vadd.f32 %v359, 1.0
    %v361 = vrcp.pop %v360
    %v362 = vmul.f32 %v360, %v361
    %v363 = vsub.f32 1.0, %v362
    %v364 = vmul.f32 %v361, %v363
    %v365 = vadd.f32 %v361, %v364
    %vm366 = vweird.f32 %v360
    %vm367 = vweird.f32 %v361
    %vm368 = vmor %vm366, %vm367
    %v369 = vsel %vm368, %v361, %v365
    %v370 = vand.u32 2147483647, %v360
    %vm371 = vcmp.eq.f32.partialorder %v370, 8.507059e+37
    %v372 = vand.u32 %v360, 2147483648
    %v373 = vor.u32 1.1754944e-38, %v372
    %v374 = vsel %vm371, %v373, %v369
    %v375 = vmul.f32 1.0, %v374
    %v376 = vtanh.pop %v342
    %v377 = vsel %vm356, %v376, %v375
    %v378 = vmul.f32 %v377, 0.0
    %380 = vrot.lane.b32.xlu0 %v377, 64
    %v381 = vpop.permute.xlu0 %380
    %v383 = vmul.f32 %v377, %v381
    %385 = vrot.lane.b32.xlu0 %v383, 32
    %v386 = vpop.permute.xlu0 %385
    %v388 = vadd.f32 %v378, %v386
    %v389 = vtanh.pop %v388
    %391 = vrot.lane.b32.xlu0 %v389, 64
    %v392 = vpop.permute.xlu0 %391
    %v394 = vmul.f32 %v377, %v392
    %v395 = vpack.c.bf16 %v394, %v394
    %397 = vrot.lane.b32.xlu0 %v395, 32
    %v398 = vpop.permute.xlu0 %397
    %v403 = vunpack.c.l.b16 %v344
    %v404 = vunpack.c.h.b16 %v344
    %v405 = vunpack.c.l.b16 %v345
    %v406 = vunpack.c.h.b16 %v345
    %v407 = vunpack.c.l.b16 %v346
    %v408 = vunpack.c.h.b16 %v346
    %v409 = vunpack.c.l.b16 %v347
    %v410 = vunpack.c.h.b16 %v347
    %v411 = vpack.c.b16 %v405, %v403
    %v412 = vpack.c.b16 %v406, %v404
    %v413 = vpack.c.b16 %v409, %v407
    %v414 = vpack.c.b16 %v410, %v408
    %v420 = vsel %vm141, %v398, 0
    %422 = vmatpush.bf16.msra.mxu0 0
    %423 = vmatpush.bf16.msra.mxu0 0
    %424 = vmatpush.bf16.msra.mxu0 0
    %425 = vmatpush.bf16.msra.mxu0 0
    %426 = vmatpush.bf16.msra.mxu0 0
    %427 = vmatpush.bf16.msra.mxu0 0
    %428 = vmatpush.bf16.msra.mxu0 %v413
    %429 = vmatpush.bf16.msra.mxu0 %v411
    %430 = vmatmul.bf16.gmra.mxu0 %v420
    %v431 = vpop.f32.mrf.mxu0
    %v432 = vadd.f32 0.0, %v431
    %v433 = vpop.f32.mrf.mxu0
    %434 = vdwg.mxu0
    %435 = vmatpush.bf16.msra.mxu0 0
    %436 = vmatpush.bf16.msra.mxu0 0
    %437 = vmatpush.bf16.msra.mxu0 0
    %438 = vmatpush.bf16.msra.mxu0 0
    %439 = vmatpush.bf16.msra.mxu0 0
    %440 = vmatpush.bf16.msra.mxu0 0
    %441 = vmatpush.bf16.msra.mxu0 %v414
    %442 = vmatpush.bf16.msra.mxu0 %v412
    %443 = vmatmul.bf16.gmra.mxu0 %v420
    %v444 = vpop.f32.mrf.mxu0
    %v445 = vadd.f32 0.0, %v444
    %v446 = vpop.f32.mrf.mxu0
    %447 = vdwg.mxu0
    %v448 = vadd.f32 %v445, %v350
    %449 = vmax.xlane.f32.xlu0 %v448
    %v450 = vpop.xlane.xlu0 %449
    %v451 = vsub.f32 %v448, %v450
    %v452 = vmul.f32 %v451, 1.442695
    %v453 = vpow.pop %v452
    %454 = vadd.xlane.f32.xlu0 %v453
    %v455 = vpop.xlane.xlu0 %454
    %v456 = vlog2.pop %v455
    %v457 = vmul.f32 %v456, 0.6931472
    %v458 = vadd.f32 %v450, %v457
    %v459 = vsub.f32 %v448, %v458
    %460 = vst [vmem:[#allocation13] sm:$0xff] %v459
    %v461 = vadd.f32 %v342, %v432
    %v462 = vxor.u32 %v461, 2147483648
    %v463 = vmul.f32 %v462, 1.442695
    %v464 = vpow.pop %v463
    %v465 = vadd.f32 %v464, 1.0
    %v466 = vrcp.pop %v465
    %v467 = vmul.f32 %v465, %v466
    %v468 = vsub.f32 1.0, %v467
    %v469 = vmul.f32 %v466, %v468
    %v470 = vadd.f32 %v466, %v469
    %vm471 = vweird.f32 %v465
    %vm472 = vweird.f32 %v466
    %vm473 = vmor %vm471, %vm472
    %v474 = vsel %vm473, %v466, %v470
    %v475 = vand.u32 2147483647, %v465
    %vm476 = vcmp.eq.f32.partialorder %v475, 8.507059e+37
    %v477 = vand.u32 %v465, 2147483648
    %v478 = vor.u32 1.1754944e-38, %v477
    %v479 = vsel %vm476, %v478, %v474
    %v480 = vmul.f32 1.0, %v479
    %v481 = vtanh.pop %v461
    %v482 = vsel %vm356, %v481, %v480
    %v483 = vmul.f32 %v482, %v388
    %485 = vrot.lane.b32.xlu0 %v482, 64
    %v486 = vpop.permute.xlu0 %485
    %v488 = vmul.f32 %v482, %v486
    %490 = vrot.lane.b32.xlu0 %v488, 32
    %v491 = vpop.permute.xlu0 %490
    %v493 = vadd.f32 %v483, %v491
    %v494 = vtanh.pop %v493
    %496 = vrot.lane.b32.xlu0 %v494, 64
    %v497 = vpop.permute.xlu0 %496
    %v499 = vmul.f32 %v482, %v497
    %v500 = vpack.c.bf16 %v499, %v499
    %502 = vrot.lane.b32.xlu0 %v500, 32
    %v503 = vpop.permute.xlu0 %502
    %v505 = vsel %vm141, %v503, 0
    %507 = vmatpush.bf16.msra.mxu0 0
    %508 = vmatpush.bf16.msra.mxu0 0
    %509 = vmatpush.bf16.msra.mxu0 0
    %510 = vmatpush.bf16.msra.mxu0 0
    %511 = vmatpush.bf16.msra.mxu0 0
    %512 = vmatpush.bf16.msra.mxu0 0
    %513 = vmatpush.bf16.msra.mxu0 %v413
    %514 = vmatpush.bf16.msra.mxu0 %v411
    %515 = vmatmul.bf16.gmra.mxu0 %v505
    %v516 = vpop.f32.mrf.mxu0
    %v517 = vadd.f32 0.0, %v516
    %v518 = vpop.f32.mrf.mxu0
    %519 = vdwg.mxu0
    %520 = vmatpush.bf16.msra.mxu0 0
    %521 = vmatpush.bf16.msra.mxu0 0
    %522 = vmatpush.bf16.msra.mxu0 0
    %523 = vmatpush.bf16.msra.mxu0 0
    %524 = vmatpush.bf16.msra.mxu0 0
    %525 = vmatpush.bf16.msra.mxu0 0
    %526 = vmatpush.bf16.msra.mxu0 %v414
    %527 = vmatpush.bf16.msra.mxu0 %v412
    %528 = vmatmul.bf16.gmra.mxu0 %v505
    %v529 = vpop.f32.mrf.mxu0
    %v530 = vadd.f32 0.0, %v529
    %v531 = vpop.f32.mrf.mxu0
    %532 = vdwg.mxu0
    %v533 = vadd.f32 %v530, %v350
    %534 = vmax.xlane.f32.xlu0 %v533
    %v535 = vpop.xlane.xlu0 %534
    %v536 = vsub.f32 %v533, %v535
    %v537 = vmul.f32 %v536, 1.442695
    %v538 = vpow.pop %v537
    %539 = vadd.xlane.f32.xlu0 %v538
    %v540 = vpop.xlane.xlu0 %539
    %v541 = vlog2.pop %v540
    %v542 = vmul.f32 %v541, 0.6931472
    %v543 = vadd.f32 %v535, %v542
    %v544 = vsub.f32 %v533, %v543
    %s545 = scalar_lea.vmem [#allocation13], 8
    %546 = vst [vmem:[%s545] sm:$0xff] %v544
    %v547 = vadd.f32 %v342, %v517
    %v548 = vxor.u32 %v547, 2147483648
    %v549 = vmul.f32 %v548, 1.442695
    %v550 = vpow.pop %v549
    %v551 = vadd.f32 %v550, 1.0
    %v552 = vrcp.pop %v551
    %v553 = vmul.f32 %v551, %v552
    %v554 = vsub.f32 1.0, %v553
    %v555 = vmul.f32 %v552, %v554
    %v556 = vadd.f32 %v552, %v555
    %vm557 = vweird.f32 %v551
    %vm558 = vweird.f32 %v552
    %vm559 = vmor %vm557, %vm558
    %v560 = vsel %vm559, %v552, %v556
    %v561 = vand.u32 2147483647, %v551
    %vm562 = vcmp.eq.f32.partialorder %v561, 8.507059e+37
    %v563 = vand.u32 %v551, 2147483648
    %v564 = vor.u32 1.1754944e-38, %v563
    %v565 = vsel %vm562, %v564, %v560
    %v566 = vmul.f32 1.0, %v565
    %v567 = vtanh.pop %v547
    %v568 = vsel %vm356, %v567, %v566
    %v569 = vmul.f32 %v568, %v493
    %571 = vrot.lane.b32.xlu0 %v568, 64
    %v572 = vpop.permute.xlu0 %571
    %v574 = vmul.f32 %v568, %v572
    %576 = vrot.lane.b32.xlu0 %v574, 32
    %v577 = vpop.permute.xlu0 %576
    %v579 = vadd.f32 %v569, %v577
    %v580 = vtanh.pop %v579
    %582 = vrot.lane.b32.xlu0 %v580, 64
    %v583 = vpop.permute.xlu0 %582
    %v585 = vmul.f32 %v568, %v583
    %v586 = vpack.c.bf16 %v585, %v585
    %588 = vrot.lane.b32.xlu0 %v586, 32
    %v589 = vpop.permute.xlu0 %588
    %v591 = vsel %vm141, %v589, 0
    %593 = vmatpush.bf16.msra.mxu0 0
    %594 = vmatpush.bf16.msra.mxu0 0
    %595 = vmatpush.bf16.msra.mxu0 0
    %596 = vmatpush.bf16.msra.mxu0 0
    %597 = vmatpush.bf16.msra.mxu0 0
    %598 = vmatpush.bf16.msra.mxu0 0
    %599 = vmatpush.bf16.msra.mxu0 %v413
    %600 = vmatpush.bf16.msra.mxu0 %v411
    %601 = vmatmul.bf16.gmra.mxu0 %v591
    %v602 = vpop.f32.mrf.mxu0
    %v603 = vadd.f32 0.0, %v602
    %v604 = vpop.f32.mrf.mxu0
    %605 = vdwg.mxu0
    %606 = vmatpush.bf16.msra.mxu0 0
    %607 = vmatpush.bf16.msra.mxu0 0
    %608 = vmatpush.bf16.msra.mxu0 0
    %609 = vmatpush.bf16.msra.mxu0 0
    %610 = vmatpush.bf16.msra.mxu0 0
    %611 = vmatpush.bf16.msra.mxu0 0
    %612 = vmatpush.bf16.msra.mxu0 %v414
    %613 = vmatpush.bf16.msra.mxu0 %v412
    %614 = vmatmul.bf16.gmra.mxu0 %v591
    %v615 = vpop.f32.mrf.mxu0
    %v616 = vadd.f32 0.0, %v615
    %v617 = vpop.f32.mrf.mxu0
    %618 = vdwg.mxu0
    %v619 = vadd.f32 %v616, %v350
    %620 = vmax.xlane.f32.xlu0 %v619
    %v621 = vpop.xlane.xlu0 %620
    %v622 = vsub.f32 %v619, %v621
    %v623 = vmul.f32 %v622, 1.442695
    %v624 = vpow.pop %v623
    %625 = vadd.xlane.f32.xlu0 %v624
    %v626 = vpop.xlane.xlu0 %625
    %v627 = vlog2.pop %v626
    %v628 = vmul.f32 %v627, 0.6931472
    %v629 = vadd.f32 %v621, %v628
    %v630 = vsub.f32 %v619, %v629
    %s631 = scalar_lea.vmem [#allocation13], 16
    %632 = vst [vmem:[%s631] sm:$0xff] %v630
    %v633 = vadd.f32 %v342, %v603
    %v634 = vxor.u32 %v633, 2147483648
    %v635 = vmul.f32 %v634, 1.442695
    %v636 = vpow.pop %v635
    %v637 = vadd.f32 %v636, 1.0
    %v638 = vrcp.pop %v637
    %v639 = vmul.f32 %v637, %v638
    %v640 = vsub.f32 1.0, %v639
    %v641 = vmul.f32 %v638, %v640
    %v642 = vadd.f32 %v638, %v641
    %vm643 = vweird.f32 %v637
    %vm644 = vweird.f32 %v638
    %vm645 = vmor %vm643, %vm644
    %v646 = vsel %vm645, %v638, %v642
    %v647 = vand.u32 2147483647, %v637
    %vm648 = vcmp.eq.f32.partialorder %v647, 8.507059e+37
    %v649 = vand.u32 %v637, 2147483648
    %v650 = vor.u32 1.1754944e-38, %v649
    %v651 = vsel %vm648, %v650, %v646
    %v652 = vmul.f32 1.0, %v651
    %v653 = vtanh.pop %v633
    %v654 = vsel %vm356, %v653, %v652
    %v655 = vmul.f32 %v654, %v579
    %657 = vrot.lane.b32.xlu0 %v654, 64
    %v658 = vpop.permute.xlu0 %657
    %v660 = vmul.f32 %v654, %v658
    %662 = vrot.lane.b32.xlu0 %v660, 32
    %v663 = vpop.permute.xlu0 %662
    %v665 = vadd.f32 %v655, %v663
    %v666 = vtanh.pop %v665
    %668 = vrot.lane.b32.xlu0 %v666, 64
    %v669 = vpop.permute.xlu0 %668
    %v671 = vmul.f32 %v654, %v669
    %v672 = vpack.c.bf16 %v671, %v671
    %674 = vrot.lane.b32.xlu0 %v672, 32
    %v675 = vpop.permute.xlu0 %674
    %v677 = vsel %vm141, %v675, 0
    %679 = vmatpush.bf16.msra.mxu0 0
    %680 = vmatpush.bf16.msra.mxu0 0
    %681 = vmatpush.bf16.msra.mxu0 0
    %682 = vmatpush.bf16.msra.mxu0 0
    %683 = vmatpush.bf16.msra.mxu0 0
    %684 = vmatpush.bf16.msra.mxu0 0
    %685 = vmatpush.bf16.msra.mxu0 %v413
    %686 = vmatpush.bf16.msra.mxu0 %v411
    %687 = vmatmul.bf16.gmra.mxu0 %v677
    %v688 = vpop.f32.mrf.mxu0
    %v689 = vadd.f32 0.0, %v688
    %v690 = vpop.f32.mrf.mxu0
    %691 = vdwg.mxu0
    %692 = vmatpush.bf16.msra.mxu0 0
    %693 = vmatpush.bf16.msra.mxu0 0
    %694 = vmatpush.bf16.msra.mxu0 0
    %695 = vmatpush.bf16.msra.mxu0 0
    %696 = vmatpush.bf16.msra.mxu0 0
    %697 = vmatpush.bf16.msra.mxu0 0
    %698 = vmatpush.bf16.msra.mxu0 %v414
    %699 = vmatpush.bf16.msra.mxu0 %v412
    %700 = vmatmul.bf16.gmra.mxu0 %v677
    %v701 = vpop.f32.mrf.mxu0
    %v702 = vadd.f32 0.0, %v701
    %v703 = vpop.f32.mrf.mxu0
    %704 = vdwg.mxu0
    %v705 = vadd.f32 %v702, %v350
    %706 = vmax.xlane.f32.xlu0 %v705
    %v707 = vpop.xlane.xlu0 %706
    %v708 = vsub.f32 %v705, %v707
    %v709 = vmul.f32 %v708, 1.442695
    %v710 = vpow.pop %v709
    %711 = vadd.xlane.f32.xlu0 %v710
    %v712 = vpop.xlane.xlu0 %711
    %v713 = vlog2.pop %v712
    %v714 = vmul.f32 %v713, 0.6931472
    %v715 = vadd.f32 %v707, %v714
    %v716 = vsub.f32 %v705, %v715
    %s717 = scalar_lea.vmem [#allocation13], 24
    %718 = vst [vmem:[%s717] sm:$0xff] %v716
    %v719 = vadd.f32 %v342, %v689
    %v720 = vxor.u32 %v719, 2147483648
    %v721 = vmul.f32 %v720, 1.442695
    %v722 = vpow.pop %v721
    %v723 = vadd.f32 %v722, 1.0
    %v724 = vrcp.pop %v723
    %v725 = vmul.f32 %v723, %v724
    %v726 = vsub.f32 1.0, %v725
    %v727 = vmul.f32 %v724, %v726
    %v728 = vadd.f32 %v724, %v727
    %vm729 = vweird.f32 %v723
    %vm730 = vweird.f32 %v724
    %vm731 = vmor %vm729, %vm730
    %v732 = vsel %vm731, %v724, %v728
    %v733 = vand.u32 2147483647, %v723
    %vm734 = vcmp.eq.f32.partialorder %v733, 8.507059e+37
    %v735 = vand.u32 %v723, 2147483648
    %v736 = vor.u32 1.1754944e-38, %v735
    %v737 = vsel %vm734, %v736, %v732
    %v738 = vmul.f32 1.0, %v737
    %v739 = vtanh.pop %v719
    %v740 = vsel %vm356, %v739, %v738
    %v741 = vmul.f32 %v740, %v665
    %743 = vrot.lane.b32.xlu0 %v740, 64
    %v744 = vpop.permute.xlu0 %743
    %v746 = vmul.f32 %v740, %v744
    %748 = vrot.lane.b32.xlu0 %v746, 32
    %v749 = vpop.permute.xlu0 %748
    %v751 = vadd.f32 %v741, %v749
    %v752 = vtanh.pop %v751
    %754 = vrot.lane.b32.xlu0 %v752, 64
    %v755 = vpop.permute.xlu0 %754
    %v757 = vmul.f32 %v740, %v755
    %v758 = vpack.c.bf16 %v757, %v757
    %760 = vrot.lane.b32.xlu0 %v758, 32
    %v761 = vpop.permute.xlu0 %760
    %v763 = vsel %vm141, %v761, 0
    %765 = vmatpush.bf16.msra.mxu0 0
    %766 = vmatpush.bf16.msra.mxu0 0
    %767 = vmatpush.bf16.msra.mxu0 0
    %768 = vmatpush.bf16.msra.mxu0 0
    %769 = vmatpush.bf16.msra.mxu0 0
    %770 = vmatpush.bf16.msra.mxu0 0
    %771 = vmatpush.bf16.msra.mxu0 %v413
    %772 = vmatpush.bf16.msra.mxu0 %v411
    %773 = vmatmul.bf16.gmra.mxu0 %v763
    %v774 = vpop.f32.mrf.mxu0
    %v775 = vadd.f32 0.0, %v774
    %v776 = vpop.f32.mrf.mxu0
    %777 = vdwg.mxu0
    %778 = vmatpush.bf16.msra.mxu0 0
    %779 = vmatpush.bf16.msra.mxu0 0
    %780 = vmatpush.bf16.msra.mxu0 0
    %781 = vmatpush.bf16.msra.mxu0 0
    %782 = vmatpush.bf16.msra.mxu0 0
    %783 = vmatpush.bf16.msra.mxu0 0
    %784 = vmatpush.bf16.msra.mxu0 %v414
    %785 = vmatpush.bf16.msra.mxu0 %v412
    %786 = vmatmul.bf16.gmra.mxu0 %v763
    %v787 = vpop.f32.mrf.mxu0
    %v788 = vadd.f32 0.0, %v787
    %v789 = vpop.f32.mrf.mxu0
    %790 = vdwg.mxu0
    %v791 = vadd.f32 %v788, %v350
    %792 = vmax.xlane.f32.xlu0 %v791
    %v793 = vpop.xlane.xlu0 %792
    %v794 = vsub.f32 %v791, %v793
    %v795 = vmul.f32 %v794, 1.442695
    %v796 = vpow.pop %v795
    %797 = vadd.xlane.f32.xlu0 %v796
    %v798 = vpop.xlane.xlu0 %797
    %v799 = vlog2.pop %v798
    %v800 = vmul.f32 %v799, 0.6931472
    %v801 = vadd.f32 %v793, %v800
    %v802 = vsub.f32 %v791, %v801
    %s803 = scalar_lea.vmem [#allocation13], 32
    %804 = vst [vmem:[%s803] sm:$0xff] %v802
    %v805 = vadd.f32 %v342, %v775
    %v806 = vxor.u32 %v805, 2147483648
    %v807 = vmul.f32 %v806, 1.442695
    %v808 = vpow.pop %v807
    %v809 = vadd.f32 %v808, 1.0
    %v810 = vrcp.pop %v809
    %v811 = vmul.f32 %v809, %v810
    %v812 = vsub.f32 1.0, %v811
    %v813 = vmul.f32 %v810, %v812
    %v814 = vadd.f32 %v810, %v813
    %vm815 = vweird.f32 %v809
    %vm816 = vweird.f32 %v810
    %vm817 = vmor %vm815, %vm816
    %v818 = vsel %vm817, %v810, %v814
    %v819 = vand.u32 2147483647, %v809
    %vm820 = vcmp.eq.f32.partialorder %v819, 8.507059e+37
    %v821 = vand.u32 %v809, 2147483648
    %v822 = vor.u32 1.1754944e-38, %v821
    %v823 = vsel %vm820, %v822, %v818
    %v824 = vmul.f32 1.0, %v823
    %v825 = vtanh.pop %v805
    %v826 = vsel %vm356, %v825, %v824
    %v827 = vmul.f32 %v826, %v751
    %829 = vrot.lane.b32.xlu0 %v826, 64
    %v830 = vpop.permute.xlu0 %829
    %v832 = vmul.f32 %v826, %v830
    %834 = vrot.lane.b32.xlu0 %v832, 32
    %v835 = vpop.permute.xlu0 %834
    %v837 = vadd.f32 %v827, %v835
    %v838 = vtanh.pop %v837
    %840 = vrot.lane.b32.xlu0 %v838, 64
    %v841 = vpop.permute.xlu0 %840
    %v843 = vmul.f32 %v826, %v841
    %v844 = vpack.c.bf16 %v843, %v843
    %846 = vrot.lane.b32.xlu0 %v844, 32
    %v847 = vpop.permute.xlu0 %846
    %v849 = vsel %vm141, %v847, 0
    %851 = vmatpush.bf16.msra.mxu0 0
    %852 = vmatpush.bf16.msra.mxu0 0
    %853 = vmatpush.bf16.msra.mxu0 0
    %854 = vmatpush.bf16.msra.mxu0 0
    %855 = vmatpush.bf16.msra.mxu0 0
    %856 = vmatpush.bf16.msra.mxu0 0
    %857 = vmatpush.bf16.msra.mxu0 %v413
    %858 = vmatpush.bf16.msra.mxu0 %v411
    %859 = vmatmul.bf16.gmra.mxu0 %v849
    %v860 = vpop.f32.mrf.mxu0
    %v861 = vadd.f32 0.0, %v860
    %v862 = vpop.f32.mrf.mxu0
    %863 = vdwg.mxu0
    %864 = vmatpush.bf16.msra.mxu0 0
    %865 = vmatpush.bf16.msra.mxu0 0
    %866 = vmatpush.bf16.msra.mxu0 0
    %867 = vmatpush.bf16.msra.mxu0 0
    %868 = vmatpush.bf16.msra.mxu0 0
    %869 = vmatpush.bf16.msra.mxu0 0
    %870 = vmatpush.bf16.msra.mxu0 %v414
    %871 = vmatpush.bf16.msra.mxu0 %v412
    %872 = vmatmul.bf16.gmra.mxu0 %v849
    %v873 = vpop.f32.mrf.mxu0
    %v874 = vadd.f32 0.0, %v873
    %v875 = vpop.f32.mrf.mxu0
    %876 = vdwg.mxu0
    %v877 = vadd.f32 %v874, %v350
    %878 = vmax.xlane.f32.xlu0 %v877
    %v879 = vpop.xlane.xlu0 %878
    %v880 = vsub.f32 %v877, %v879
    %v881 = vmul.f32 %v880, 1.442695
    %v882 = vpow.pop %v881
    %883 = vadd.xlane.f32.xlu0 %v882
    %v884 = vpop.xlane.xlu0 %883
    %v885 = vlog2.pop %v884
    %v886 = vmul.f32 %v885, 0.6931472
    %v887 = vadd.f32 %v879, %v886
    %v888 = vsub.f32 %v877, %v887
    %s889 = scalar_lea.vmem [#allocation13], 40
    %890 = vst [vmem:[%s889] sm:$0xff] %v888
    %v891 = vadd.f32 %v342, %v861
    %v892 = vxor.u32 %v891, 2147483648
    %v893 = vmul.f32 %v892, 1.442695
    %v894 = vpow.pop %v893
    %v895 = vadd.f32 %v894, 1.0
    %v896 = vrcp.pop %v895
    %v897 = vmul.f32 %v895, %v896
    %v898 = vsub.f32 1.0, %v897
    %v899 = vmul.f32 %v896, %v898
    %v900 = vadd.f32 %v896, %v899
    %vm901 = vweird.f32 %v895
    %vm902 = vweird.f32 %v896
    %vm903 = vmor %vm901, %vm902
    %v904 = vsel %vm903, %v896, %v900
    %v905 = vand.u32 2147483647, %v895
    %vm906 = vcmp.eq.f32.partialorder %v905, 8.507059e+37
    %v907 = vand.u32 %v895, 2147483648
    %v908 = vor.u32 1.1754944e-38, %v907
    %v909 = vsel %vm906, %v908, %v904
    %v910 = vmul.f32 1.0, %v909
    %v911 = vtanh.pop %v891
    %v912 = vsel %vm356, %v911, %v910
    %v913 = vmul.f32 %v912, %v837
    %915 = vrot.lane.b32.xlu0 %v912, 64
    %v916 = vpop.permute.xlu0 %915
    %v918 = vmul.f32 %v912, %v916
    %920 = vrot.lane.b32.xlu0 %v918, 32
    %v921 = vpop.permute.xlu0 %920
    %v923 = vadd.f32 %v913, %v921
    %v924 = vtanh.pop %v923
    %926 = vrot.lane.b32.xlu0 %v924, 64
    %v927 = vpop.permute.xlu0 %926
    %v929 = vmul.f32 %v912, %v927
    %v930 = vpack.c.bf16 %v929, %v929
    %932 = vrot.lane.b32.xlu0 %v930, 32
    %v933 = vpop.permute.xlu0 %932
    %v935 = vsel %vm141, %v933, 0
    %937 = vmatpush.bf16.msra.mxu0 0
    %938 = vmatpush.bf16.msra.mxu0 0
    %939 = vmatpush.bf16.msra.mxu0 0
    %940 = vmatpush.bf16.msra.mxu0 0
    %941 = vmatpush.bf16.msra.mxu0 0
    %942 = vmatpush.bf16.msra.mxu0 0
    %943 = vmatpush.bf16.msra.mxu0 %v413
    %944 = vmatpush.bf16.msra.mxu0 %v411
    %945 = vmatmul.bf16.gmra.mxu0 %v935
    %v946 = vpop.f32.mrf.mxu0
    %v947 = vadd.f32 0.0, %v946
    %v948 = vpop.f32.mrf.mxu0
    %949 = vdwg.mxu0
    %950 = vmatpush.bf16.msra.mxu0 0
    %951 = vmatpush.bf16.msra.mxu0 0
    %952 = vmatpush.bf16.msra.mxu0 0
    %953 = vmatpush.bf16.msra.mxu0 0
    %954 = vmatpush.bf16.msra.mxu0 0
    %955 = vmatpush.bf16.msra.mxu0 0
    %956 = vmatpush.bf16.msra.mxu0 %v414
    %957 = vmatpush.bf16.msra.mxu0 %v412
    %958 = vmatmul.bf16.gmra.mxu0 %v935
    %v959 = vpop.f32.mrf.mxu0
    %v960 = vadd.f32 0.0, %v959
    %v961 = vpop.f32.mrf.mxu0
    %962 = vdwg.mxu0
    %v963 = vadd.f32 %v960, %v350
    %964 = vmax.xlane.f32.xlu0 %v963
    %v965 = vpop.xlane.xlu0 %964
    %v966 = vsub.f32 %v963, %v965
    %v967 = vmul.f32 %v966, 1.442695
    %v968 = vpow.pop %v967
    %969 = vadd.xlane.f32.xlu0 %v968
    %v970 = vpop.xlane.xlu0 %969
    %v971 = vlog2.pop %v970
    %v972 = vmul.f32 %v971, 0.6931472
    %v973 = vadd.f32 %v965, %v972
    %v974 = vsub.f32 %v963, %v973
    %s975 = scalar_lea.vmem [#allocation13], 48
    %976 = vst [vmem:[%s975] sm:$0xff] %v974
    %v977 = vadd.f32 %v342, %v947
    %v978 = vxor.u32 %v977, 2147483648
    %v979 = vmul.f32 %v978, 1.442695
    %v980 = vpow.pop %v979
    %v981 = vadd.f32 %v980, 1.0
    %v982 = vrcp.pop %v981
    %v983 = vmul.f32 %v981, %v982
    %v984 = vsub.f32 1.0, %v983
    %v985 = vmul.f32 %v982, %v984
    %v986 = vadd.f32 %v982, %v985
    %vm987 = vweird.f32 %v981
    %vm988 = vweird.f32 %v982
    %vm989 = vmor %vm987, %vm988
    %v990 = vsel %vm989, %v982, %v986
    %v991 = vand.u32 2147483647, %v981
    %vm992 = vcmp.eq.f32.partialorder %v991, 8.507059e+37
    %v993 = vand.u32 %v981, 2147483648
    %v994 = vor.u32 1.1754944e-38, %v993
    %v995 = vsel %vm992, %v994, %v990
    %v996 = vmul.f32 1.0, %v995
    %v997 = vtanh.pop %v977
    %v998 = vsel %vm356, %v997, %v996
    %v999 = vmul.f32 %v998, %v923
    %1001 = vrot.lane.b32.xlu0 %v998, 64
    %v1002 = vpop.permute.xlu0 %1001
    %v1004 = vmul.f32 %v998, %v1002
    %1006 = vrot.lane.b32.xlu0 %v1004, 32
    %v1007 = vpop.permute.xlu0 %1006
    %v1009 = vadd.f32 %v999, %v1007
    %v1010 = vtanh.pop %v1009
    %1012 = vrot.lane.b32.xlu0 %v1010, 64
    %v1013 = vpop.permute.xlu0 %1012
    %v1015 = vmul.f32 %v998, %v1013
    %v1016 = vpack.c.bf16 %v1015, %v1015
    %1018 = vrot.lane.b32.xlu0 %v1016, 32
    %v1019 = vpop.permute.xlu0 %1018
    %v1021 = vsel %vm141, %v1019, 0
    %1023 = vmatpush.bf16.msra.mxu0 0
    %1024 = vmatpush.bf16.msra.mxu0 0
    %1025 = vmatpush.bf16.msra.mxu0 0
    %1026 = vmatpush.bf16.msra.mxu0 0
    %1027 = vmatpush.bf16.msra.mxu0 0
    %1028 = vmatpush.bf16.msra.mxu0 0
    %1029 = vmatpush.bf16.msra.mxu0 %v414
    %1030 = vmatpush.bf16.msra.mxu0 %v412
    %1031 = vmatmul.bf16.gmra.mxu0 %v1021
    %v1032 = vpop.f32.mrf.mxu0
    %v1033 = vadd.f32 0.0, %v1032
    %v1034 = vpop.f32.mrf.mxu0
    %1035 = vdwg.mxu0
    %v1036 = vadd.f32 %v1033, %v350
    %1037 = vmax.xlane.f32.xlu0 %v1036
    %v1038 = vpop.xlane.xlu0 %1037
    %v1039 = vsub.f32 %v1036, %v1038
    %v1040 = vmul.f32 %v1039, 1.442695
    %v1041 = vpow.pop %v1040
    %1042 = vadd.xlane.f32.xlu0 %v1041
    %v1043 = vpop.xlane.xlu0 %1042
    %v1044 = vlog2.pop %v1043
    %v1045 = vmul.f32 %v1044, 0.6931472
    %v1046 = vadd.f32 %v1038, %v1045
    %v1047 = vsub.f32 %v1036, %v1046
    %s1048 = scalar_lea.vmem [#allocation13], 56
    %1049 = vst [vmem:[%s1048] sm:$0xff] %v1047
    // Predicated region
    $region66: #{tpu_custom_call.1} parent=1 // pred_check
      _
    $region67: #{tpu_custom_call.1} parent=1 // pred_check_branch
      %1051 = sbr.rel (0) target = $region69
    $region68: #{tpu_custom_call.1} parent=1 // pred_region
      %1053 = vsyncadd [#allocation4], 0
      %s1054 = sshll.u32 [#allocation13], 4
      %s1055 = int_to_ptr.vmem [resolvable:$true] %s1054
      %s1056 = sshll.u32 %s10, 4
      %s1057 = int_to_ptr.hbm [resolvable:$true] %s1056
      %1062 = dma.vmem_to_hbm [thread:$0]  %s1055, 1024, %s1057, [#allocation4], 128, 128, 8
    $region69: #{tpu_custom_call.1} parent=1 // pred_fallthru
      _
    // Predicated region
    $region70: #{tpu_custom_call.1} parent=1 // pred_check
      _
    $region71: #{tpu_custom_call.1} parent=1 // pred_check_branch
      %1064 = sbr.rel (0) target = $region73
    $region72: #{tpu_custom_call.1} parent=1 // pred_region
      %1066 = vsyncadd [#allocation15], 0
      %s1068 = sshll.u32 [#allocation14], 4
      %s1069 = int_to_ptr.vmem [resolvable:$true] %s1068
      %s1070 = sshll.u32 %s11, 4
      %s1071 = int_to_ptr.hbm [resolvable:$true] %s1070
      %1073 = dma.vmem_to_hbm [thread:$0]  %s1069, 128, %s1071, [#allocation15]
    $region73: #{tpu_custom_call.1} parent=1 // pred_fallthru
      _
    // Predicated region
    $region74: #{tpu_custom_call.1} parent=1 // pred_check
      _
    $region75: #{tpu_custom_call.1} parent=1 // pred_check_branch
      %1075 = sbr.rel (0) target = $region77
    $region76: #{tpu_custom_call.1} parent=1 // pred_region
      %1077 = vsyncadd [#allocation15], 0
      %s1079 = sshll.u32 [#allocation16], 4
      %s1080 = int_to_ptr.vmem [resolvable:$true] %s1079
      %s1081 = sshll.u32 %s12, 4
      %s1082 = int_to_ptr.hbm [resolvable:$true] %s1081
      %1084 = dma.vmem_to_hbm [thread:$0]  %s1080, 128, %s1082, [#allocation15]
    $region77: #{tpu_custom_call.1} parent=1 // pred_fallthru
      _
    // Predicated region
    $region78: #{tpu_custom_call.1} parent=1 // pred_check
      _
    $region79: #{tpu_custom_call.1} parent=1 // pred_check_branch
      %1086 = sbr.rel (0) target = $region81
    $region80: #{tpu_custom_call.1} parent=1 // pred_region
      %1088 = dma.done [#allocation4], 1024
    $region81: #{tpu_custom_call.1} parent=1 // pred_fallthru
      _
    // Predicated region
    $region82: #{tpu_custom_call.1} parent=1 // pred_check
      _
    $region83: #{tpu_custom_call.1} parent=1 // pred_check_branch
      %1090 = sbr.rel (0) target = $region85
    $region84: #{tpu_custom_call.1} parent=1 // pred_region
      %1092 = dma.done [#allocation15], 128
    $region85: #{tpu_custom_call.1} parent=1 // pred_fallthru
      _
    // Predicated region
    $region86: #{tpu_custom_call.1} parent=1 // pred_check
      _
    $region87: #{tpu_custom_call.1} parent=1 // pred_check_branch
      %1094 = sbr.rel (0) target = $region89
    $region88: #{tpu_custom_call.1} parent=1 // pred_region
      %1096 = dma.done [#allocation15], 128
    $region89: #{tpu_custom_call.1} parent=1 // pred_fallthru
      _
    %1097 = vsyncpa [#allocation3], 1
    %1098 = vsyncpa [#allocation6], 1
    %1099 = vsyncpa [#allocation9], 1
    %1100 = vsyncpa [#allocation12], 1
    %1101 = vsyncpa [#allocation4], 1
    %1102 = vsyncpa [#allocation15], 1

</llo_original>
